<compile_context>
chip_gen: v5e
topology: v5e:2x2
jax: 0.10.0
libtpu: 0.0.40
codegen_flags: <defaults>
</compile_context>

<pallas_src>
import jax
import jax.numpy as jnp
from jax import lax
from jax.experimental import pallas as pl
from jax.experimental.pallas import tpu as pltpu

EPS = 1e-5  # torch InstanceNorm1d default eps


def _gelu(v):
    # torch.nn.GELU() default (approximate='none') -> exact erf GELU
    return 0.5 * v * (1.0 + lax.erf(v * 0.7071067811865476))


def resconv1d_kernel(x_ref, w1_ref, g1_ref, b1_ref, w2_ref, g2_ref, b2_ref, o_ref):
    B, T, C = x_ref.shape           # batch tile, time, out_channels
    NB = w1_ref.shape[0]            # number of stacked blocks
    K = w1_ref.shape[1] // C        # conv kernel size
    P = (K - 1) // 2
    M = B * T                       # matmul M dim

    # row-within-sample index, built once; used to patch the replicate edges
    t_idx = lax.broadcasted_iota(jnp.int32, (B, T, C), 1).reshape(M, C)

    def conv_same_replicate(h, w_flat):
        # h: (M, C); w_flat: (K*C, C).  out[r, co] = sum_k,ci h[clip_t(r, k-P), ci] * w[k,ci,co]
        h3 = h.reshape(B, T, C)
        first = jnp.broadcast_to(h3[:, 0:1, :], (B, T, C)).reshape(M, C)
        last = jnp.broadcast_to(h3[:, T - 1:T, :], (B, T, C)).reshape(M, C)
        taps = []
        for k in range(K):          # static unroll, K = 11
            d = k - P
            if d == 0:
                sh = h
            else:
                # cyclic sublane roll (XLU); cross-sample / wrap rows are exactly the
                # first/last |d| rows of each sample, overwritten by the replicate patch.
                sh = pltpu.roll(h, shift=(-d) % M, axis=0)
                if d < 0:
                    sh = jnp.where(t_idx < -d, first, sh)
                else:
                    sh = jnp.where(t_idx >= T - d, last, sh)
            taps.append(sh)
        hcat = jnp.concatenate(taps, axis=1)            # (M, K*C), lane concat
        return jnp.dot(hcat, w_flat, preferred_element_type=jnp.float32)

    def instance_norm(h, gamma, beta):
        # per (sample, channel) over T; biased variance (single pass), eps=1e-5, affine
        h3 = h.reshape(B, T, C)
        s1 = jnp.sum(h3, axis=1, keepdims=True)
        s2 = jnp.sum(h3 * h3, axis=1, keepdims=True)
        mean = s1 * (1.0 / T)
        var = jnp.maximum(s2 * (1.0 / T) - mean * mean, 0.0)
        inv = lax.rsqrt(var + EPS)
        return ((h3 - mean) * inv * gamma + beta).reshape(M, C)

    x = x_ref[...].reshape(M, C)
    for blk in range(NB):           # static unroll; activation never leaves VMEM/vregs
        h = conv_same_replicate(x, w1_ref[blk])
        h = instance_norm(h, g1_ref[blk], b1_ref[blk])
        h = _gelu(h)
        h = conv_same_replicate(h, w2_ref[blk])
        h = instance_norm(h, g2_ref[blk], b2_ref[blk])
        x = _gelu(x + h)            # residual: x IS x_init for this config (see wrapper)

    o_ref[...] = x.reshape(B, T, C).astype(o_ref.dtype)


def _choose_batch_tile(N, T):
    """Largest divisor of N keeping the per-step matmul M = tile*T around a few hundred rows."""
    target_rows = 512
    best = 1
    for d in range(1, N + 1):
        if N % d == 0 and d * T <= max(target_rows, T):
            best = d
    return best


def res_conv1d_forward(x_nct, params, out_channels, kernel_size, downsampling_method=0):
    """ResConv1D.forward (downsample=False, bottleneck_factor=1, dropout=0, instance norm).
    x_nct: (N, C, T) torch layout. downsampling_method unused (no downsampling here)."""
    del downsampling_method
    N, Cin, T = x_nct.shape
    Cout = out_channels
    K = kernel_size
    NB = len(params)

    # (N, T, C): channels on lanes, time on sublanes.
    x = jnp.transpose(x_nct, (0, 2, 1))
    if Cin < Cout:
        # torch: x_init = F.pad(x, (0,0,0,Cout-Cin)).  Padding the input once (and the
        # block-0 conv1 weight with matching zero rows) makes x_init == x for every block,
        # so no separate x_init tensor / DMA is needed.  Numerically identical.
        x = jnp.pad(x, ((0, 0), (0, 0), (0, Cout - Cin)))

    W1, G1, B1, W2, G2, B2 = [], [], [], [], [], []
    for (w1, g1, b1, w2, g2, b2) in params:
        cin = w1.shape[1]
        if cin < Cout:
            w1 = jnp.pad(w1, ((0, 0), (0, Cout - cin), (0, 0)))   # zero input-channel rows
        W1.append(w1.reshape(K * Cout, Cout))                      # tap-major flatten
        W2.append(w2.reshape(K * Cout, Cout))
        G1.append(g1.reshape(1, Cout)); B1.append(b1.reshape(1, Cout))
        G2.append(g2.reshape(1, Cout)); B2.append(b2.reshape(1, Cout))
    W1 = jnp.stack(W1); W2 = jnp.stack(W2)
    G1 = jnp.stack(G1); B1 = jnp.stack(B1)
    G2 = jnp.stack(G2); B2 = jnp.stack(B2)

    BT = _choose_batch_tile(N, T)
    grid = (N // BT,)

    def bcast3(shape):
        return pl.BlockSpec(shape, lambda n: (0, 0, 0))

    out = pl.pallas_call(
        resconv1d_kernel,
        out_shape=jax.ShapeDtypeStruct((N, T, Cout), jnp.float32),
        grid_spec=pltpu.PrefetchScalarGridSpec(
            num_scalar_prefetch=0,
            grid=grid,
            in_specs=[
                pl.BlockSpec((BT, T, Cout), lambda n: (n, 0, 0)),   # activation tile
                bcast3((NB, K * Cout, Cout)),                       # W1 (all blocks)
                bcast3((NB, 1, Cout)),                              # gamma1
                bcast3((NB, 1, Cout)),                              # beta1
                bcast3((NB, K * Cout, Cout)),                       # W2
                bcast3((NB, 1, Cout)),                              # gamma2
                bcast3((NB, 1, Cout)),                              # beta2
            ],
            out_specs=pl.BlockSpec((BT, T, Cout), lambda n: (n, 0, 0)),
        ),
        compiler_params=pltpu.CompilerParams(
            dimension_semantics=("parallel",)),
    )(x, W1, G1, B1, W2, G2, B2)

    return jnp.transpose(out, (0, 2, 1))  # back to (N, C, T)


def init_params(key, in_channels, out_channels, num_blocks, kernel_size):
    """Deterministic synthetic parameters (torch conv weight (out,in,K) -> ours (K,in,out))."""
    params = []
    cin = in_channels
    for _ in range(num_blocks):
        key, k1, k2, k3, k4, k5, k6 = jax.random.split(key, 7)
        w1 = 0.1 * jax.random.normal(k1, (kernel_size, cin, out_channels), jnp.float32)
        g1 = 1.0 + 0.1 * jax.random.normal(k2, (1, out_channels), jnp.float32)
        b1 = 0.1 * jax.random.normal(k3, (1, out_channels), jnp.float32)
        w2 = 0.1 * jax.random.normal(k4, (kernel_size, out_channels, out_channels), jnp.float32)
        g2 = 1.0 + 0.1 * jax.random.normal(k5, (1, out_channels), jnp.float32)
        b2 = 0.1 * jax.random.normal(k6, (1, out_channels), jnp.float32)
        params.append((w1, g1, b1, w2, g2, b2))
        cin = out_channels
    return params


if __name__ == "__main__":
    N, C_IN, C_OUT, T = 2, 4, 16, 16
    NUM_BLOCKS, KSIZE = 2, 11

    key = jax.random.PRNGKey(0)
    kx, kp = jax.random.split(key)
    x = jax.random.normal(kx, (N, C_IN, T), jnp.float32)  # torch NCT layout
    params = init_params(kp, C_IN, C_OUT, NUM_BLOCKS, KSIZE)

    out = res_conv1d_forward(x, params, C_OUT, KSIZE, downsampling_method=0)
    out = jax.block_until_ready(out)
    assert out.shape == (N, C_OUT, T)
    assert bool(jnp.all(jnp.isfinite(out)))
    print("KERNEL_OK")
</pallas_src>

<mosaic_0001>
module attributes {stable_mosaic.version = 11 : i64} {
  func.func @resconv1d_kernel(%arg0: i32, %arg1: memref<2x16x16xf32, #tpu.memory_space<vmem>>, %arg2: memref<2x176x16xf32, #tpu.memory_space<vmem>>, %arg3: memref<2x1x16xf32, #tpu.memory_space<vmem>>, %arg4: memref<2x1x16xf32, #tpu.memory_space<vmem>>, %arg5: memref<2x176x16xf32, #tpu.memory_space<vmem>>, %arg6: memref<2x1x16xf32, #tpu.memory_space<vmem>>, %arg7: memref<2x1x16xf32, #tpu.memory_space<vmem>>, %arg8: memref<2x16x16xf32, #tpu.memory_space<vmem>>) attributes {dimension_semantics = [#tpu.dimension_semantics<parallel>], iteration_bounds = array<i64: 1>, scalar_prefetch = 0 : i64, scratch_operands = 0 : i64, tpu.core_type = #tpu.core_type<tc>, window_params = [{transform_indices = @transform_0, window_bounds = array<i64: 2, 16, 16>}, {pipeline_mode = #tpu.pipeline_mode<synchronous>, transform_indices = @transform_1, window_bounds = array<i64: 2, 176, 16>}, {pipeline_mode = #tpu.pipeline_mode<synchronous>, transform_indices = @transform_2, window_bounds = array<i64: 2, 1, 16>}, {pipeline_mode = #tpu.pipeline_mode<synchronous>, transform_indices = @transform_3, window_bounds = array<i64: 2, 1, 16>}, {pipeline_mode = #tpu.pipeline_mode<synchronous>, transform_indices = @transform_4, window_bounds = array<i64: 2, 176, 16>}, {pipeline_mode = #tpu.pipeline_mode<synchronous>, transform_indices = @transform_5, window_bounds = array<i64: 2, 1, 16>}, {pipeline_mode = #tpu.pipeline_mode<synchronous>, transform_indices = @transform_6, window_bounds = array<i64: 2, 1, 16>}, {transform_indices = @transform_7, window_bounds = array<i64: 2, 16, 16>}]} {
    %0 = tpu.iota {dimensions = array<i32: 1>} : vector<2x16x16xi32>
    %1 = vector.shape_cast %0 : vector<2x16x16xi32> to vector<32x16xi32>
    %c0 = arith.constant 0 : index
    %c0_0 = arith.constant 0 : index
    %c0_1 = arith.constant 0 : index
    %2 = vector.load %arg1[%c0, %c0_0, %c0_1] : memref<2x16x16xf32, #tpu.memory_space<vmem>>, vector<2x16x16xf32>
    %3 = vector.shape_cast %2 : vector<2x16x16xf32> to vector<32x16xf32>
    %c0_2 = arith.constant 0 : index
    %c0_3 = arith.constant 0 : index
    %c0_4 = arith.constant 0 : index
    %4 = vector.load %arg2[%c0_2, %c0_3, %c0_4] : memref<2x176x16xf32, #tpu.memory_space<vmem>>, vector<1x176x16xf32>
    %5 = vector.shape_cast %4 : vector<1x176x16xf32> to vector<176x16xf32>
    %6 = vector.shape_cast %3 : vector<32x16xf32> to vector<2x16x16xf32>
    %7 = vector.extract_strided_slice %6 {offsets = [0, 0, 0], sizes = [2, 1, 16], strides = [1, 1, 1]} : vector<2x16x16xf32> to vector<2x1x16xf32>
    %8 = vector.shape_cast %7 : vector<2x1x16xf32> to vector<2x1x16xf32>
    %9 = vector.broadcast %8 : vector<2x1x16xf32> to vector<2x16x16xf32>
    %10 = vector.shape_cast %9 : vector<2x16x16xf32> to vector<32x16xf32>
    %11 = vector.extract_strided_slice %6 {offsets = [0, 15, 0], sizes = [2, 1, 16], strides = [1, 1, 1]} : vector<2x16x16xf32> to vector<2x1x16xf32>
    %12 = vector.shape_cast %11 : vector<2x1x16xf32> to vector<2x1x16xf32>
    %13 = vector.broadcast %12 : vector<2x1x16xf32> to vector<2x16x16xf32>
    %14 = vector.shape_cast %13 : vector<2x16x16xf32> to vector<32x16xf32>
    %c5_i32 = arith.constant 5 : i32
    %15 = tpu.dynamic_rotate %3 by %c5_i32 dim 0 : vector<32x16xf32>, i32 -> vector<32x16xf32>
    %c5_i32_5 = arith.constant 5 : i32
    %16 = vector.broadcast %c5_i32_5 : i32 to vector<32x16xi32>
    %17 = arith.cmpi slt, %1, %16 : vector<32x16xi32>
    %18 = arith.select %17, %10, %15 : vector<32x16xi1>, vector<32x16xf32>
    %c4_i32 = arith.constant 4 : i32
    %19 = tpu.dynamic_rotate %3 by %c4_i32 dim 0 : vector<32x16xf32>, i32 -> vector<32x16xf32>
    %c4_i32_6 = arith.constant 4 : i32
    %20 = vector.broadcast %c4_i32_6 : i32 to vector<32x16xi32>
    %21 = arith.cmpi slt, %1, %20 : vector<32x16xi32>
    %22 = arith.select %21, %10, %19 : vector<32x16xi1>, vector<32x16xf32>
    %c3_i32 = arith.constant 3 : i32
    %23 = tpu.dynamic_rotate %3 by %c3_i32 dim 0 : vector<32x16xf32>, i32 -> vector<32x16xf32>
    %c3_i32_7 = arith.constant 3 : i32
    %24 = vector.broadcast %c3_i32_7 : i32 to vector<32x16xi32>
    %25 = arith.cmpi slt, %1, %24 : vector<32x16xi32>
    %26 = arith.select %25, %10, %23 : vector<32x16xi1>, vector<32x16xf32>
    %c2_i32 = arith.constant 2 : i32
    %27 = tpu.dynamic_rotate %3 by %c2_i32 dim 0 : vector<32x16xf32>, i32 -> vector<32x16xf32>
    %c2_i32_8 = arith.constant 2 : i32
    %28 = vector.broadcast %c2_i32_8 : i32 to vector<32x16xi32>
    %29 = arith.cmpi slt, %1, %28 : vector<32x16xi32>
    %30 = arith.select %29, %10, %27 : vector<32x16xi1>, vector<32x16xf32>
    %c1_i32 = arith.constant 1 : i32
    %31 = tpu.dynamic_rotate %3 by %c1_i32 dim 0 : vector<32x16xf32>, i32 -> vector<32x16xf32>
    %c1_i32_9 = arith.constant 1 : i32
    %32 = vector.broadcast %c1_i32_9 : i32 to vector<32x16xi32>
    %33 = arith.cmpi slt, %1, %32 : vector<32x16xi32>
    %34 = arith.select %33, %10, %31 : vector<32x16xi1>, vector<32x16xf32>
    %c31_i32 = arith.constant 31 : i32
    %35 = tpu.dynamic_rotate %3 by %c31_i32 dim 0 : vector<32x16xf32>, i32 -> vector<32x16xf32>
    %c15_i32 = arith.constant 15 : i32
    %36 = vector.broadcast %c15_i32 : i32 to vector<32x16xi32>
    %37 = arith.cmpi sge, %1, %36 : vector<32x16xi32>
    %38 = arith.select %37, %14, %35 : vector<32x16xi1>, vector<32x16xf32>
    %c30_i32 = arith.constant 30 : i32
    %39 = tpu.dynamic_rotate %3 by %c30_i32 dim 0 : vector<32x16xf32>, i32 -> vector<32x16xf32>
    %c14_i32 = arith.constant 14 : i32
    %40 = vector.broadcast %c14_i32 : i32 to vector<32x16xi32>
    %41 = arith.cmpi sge, %1, %40 : vector<32x16xi32>
    %42 = arith.select %41, %14, %39 : vector<32x16xi1>, vector<32x16xf32>
    %c29_i32 = arith.constant 29 : i32
    %43 = tpu.dynamic_rotate %3 by %c29_i32 dim 0 : vector<32x16xf32>, i32 -> vector<32x16xf32>
    %c13_i32 = arith.constant 13 : i32
    %44 = vector.broadcast %c13_i32 : i32 to vector<32x16xi32>
    %45 = arith.cmpi sge, %1, %44 : vector<32x16xi32>
    %46 = arith.select %45, %14, %43 : vector<32x16xi1>, vector<32x16xf32>
    %c28_i32 = arith.constant 28 : i32
    %47 = tpu.dynamic_rotate %3 by %c28_i32 dim 0 : vector<32x16xf32>, i32 -> vector<32x16xf32>
    %c12_i32 = arith.constant 12 : i32
    %48 = vector.broadcast %c12_i32 : i32 to vector<32x16xi32>
    %49 = arith.cmpi sge, %1, %48 : vector<32x16xi32>
    %50 = arith.select %49, %14, %47 : vector<32x16xi1>, vector<32x16xf32>
    %c27_i32 = arith.constant 27 : i32
    %51 = tpu.dynamic_rotate %3 by %c27_i32 dim 0 : vector<32x16xf32>, i32 -> vector<32x16xf32>
    %c11_i32 = arith.constant 11 : i32
    %52 = vector.broadcast %c11_i32 : i32 to vector<32x16xi32>
    %53 = arith.cmpi sge, %1, %52 : vector<32x16xi32>
    %54 = arith.select %53, %14, %51 : vector<32x16xi1>, vector<32x16xf32>
    %55 = tpu.concatenate %18, %22, %26, %30, %34, %3, %38, %42, %46, %50, %54 in 1 : vector<32x16xf32>, vector<32x16xf32>, vector<32x16xf32>, vector<32x16xf32>, vector<32x16xf32>, vector<32x16xf32>, vector<32x16xf32>, vector<32x16xf32>, vector<32x16xf32>, vector<32x16xf32>, vector<32x16xf32> -> vector<32x176xf32>
    %cst = arith.constant dense<0.000000e+00> : vector<32x16xf32>
    %56 = tpu.matmul %55, %5, %cst {dimension_numbers = #tpu.dot_dimension_numbers<[1], [0], [0], [1], [0, 0, 1, 1], [], []>} : vector<32x176xf32>, vector<176x16xf32>, vector<32x16xf32> -> vector<32x16xf32>
    %c0_10 = arith.constant 0 : index
    %c0_11 = arith.constant 0 : index
    %c0_12 = arith.constant 0 : index
    %57 = vector.load %arg3[%c0_10, %c0_11, %c0_12] : memref<2x1x16xf32, #tpu.memory_space<vmem>>, vector<1x1x16xf32>
    %58 = vector.shape_cast %57 : vector<1x1x16xf32> to vector<1x16xf32>
    %c0_13 = arith.constant 0 : index
    %c0_14 = arith.constant 0 : index
    %c0_15 = arith.constant 0 : index
    %59 = vector.load %arg4[%c0_13, %c0_14, %c0_15] : memref<2x1x16xf32, #tpu.memory_space<vmem>>, vector<1x1x16xf32>
    %60 = vector.shape_cast %59 : vector<1x1x16xf32> to vector<1x16xf32>
    %61 = vector.shape_cast %56 : vector<32x16xf32> to vector<2x16x16xf32>
    %cst_16 = arith.constant dense<0.000000e+00> : vector<2x16xf32>
    %62 = vector.multi_reduction <add>, %61, %cst_16 [1] : vector<2x16x16xf32> to vector<2x16xf32>
    %63 = vector.shape_cast %62 : vector<2x16xf32> to vector<2x1x16xf32>
    %64 = arith.mulf %61, %61 : vector<2x16x16xf32>
    %cst_17 = arith.constant dense<0.000000e+00> : vector<2x16xf32>
    %65 = vector.multi_reduction <add>, %64, %cst_17 [1] : vector<2x16x16xf32> to vector<2x16xf32>
    %66 = vector.shape_cast %65 : vector<2x16xf32> to vector<2x1x16xf32>
    %cst_18 = arith.constant 6.250000e-02 : f32
    %67 = vector.broadcast %cst_18 : f32 to vector<2x1x16xf32>
    %68 = arith.mulf %63, %67 : vector<2x1x16xf32>
    %cst_19 = arith.constant 6.250000e-02 : f32
    %69 = vector.broadcast %cst_19 : f32 to vector<2x1x16xf32>
    %70 = arith.mulf %66, %69 : vector<2x1x16xf32>
    %71 = arith.mulf %68, %68 : vector<2x1x16xf32>
    %72 = arith.subf %70, %71 : vector<2x1x16xf32>
    %cst_20 = arith.constant 0.000000e+00 : f32
    %73 = vector.broadcast %cst_20 : f32 to vector<2x1x16xf32>
    %74 = arith.maximumf %72, %73 : vector<2x1x16xf32>
    %cst_21 = arith.constant 9.99999974E-6 : f32
    %75 = vector.broadcast %cst_21 : f32 to vector<2x1x16xf32>
    %76 = arith.addf %74, %75 : vector<2x1x16xf32>
    %77 = math.rsqrt %76 : vector<2x1x16xf32>
    %78 = vector.broadcast %68 : vector<2x1x16xf32> to vector<2x16x16xf32>
    %79 = arith.subf %61, %78 : vector<2x16x16xf32>
    %80 = vector.broadcast %77 : vector<2x1x16xf32> to vector<2x16x16xf32>
    %81 = arith.mulf %79, %80 : vector<2x16x16xf32>
    %82 = vector.shape_cast %58 : vector<1x16xf32> to vector<1x1x16xf32>
    %83 = vector.broadcast %82 : vector<1x1x16xf32> to vector<2x16x16xf32>
    %84 = arith.mulf %81, %83 : vector<2x16x16xf32>
    %85 = vector.shape_cast %60 : vector<1x16xf32> to vector<1x1x16xf32>
    %86 = vector.broadcast %85 : vector<1x1x16xf32> to vector<2x16x16xf32>
    %87 = arith.addf %84, %86 : vector<2x16x16xf32>
    %88 = vector.shape_cast %87 : vector<2x16x16xf32> to vector<32x16xf32>
    %cst_22 = arith.constant 5.000000e-01 : f32
    %89 = vector.broadcast %cst_22 : f32 to vector<32x16xf32>
    %90 = arith.mulf %89, %88 : vector<32x16xf32>
    %cst_23 = arith.constant 0.707106769 : f32
    %91 = vector.broadcast %cst_23 : f32 to vector<32x16xf32>
    %92 = arith.mulf %88, %91 : vector<32x16xf32>
    %93 = math.erf %92 : vector<32x16xf32>
    %cst_24 = arith.constant 1.000000e+00 : f32
    %94 = vector.broadcast %cst_24 : f32 to vector<32x16xf32>
    %95 = arith.addf %94, %93 : vector<32x16xf32>
    %96 = arith.mulf %90, %95 : vector<32x16xf32>
    %c0_25 = arith.constant 0 : index
    %c0_26 = arith.constant 0 : index
    %c0_27 = arith.constant 0 : index
    %97 = vector.load %arg5[%c0_25, %c0_26, %c0_27] : memref<2x176x16xf32, #tpu.memory_space<vmem>>, vector<1x176x16xf32>
    %98 = vector.shape_cast %97 : vector<1x176x16xf32> to vector<176x16xf32>
    %99 = vector.shape_cast %96 : vector<32x16xf32> to vector<2x16x16xf32>
    %100 = vector.extract_strided_slice %99 {offsets = [0, 0, 0], sizes = [2, 1, 16], strides = [1, 1, 1]} : vector<2x16x16xf32> to vector<2x1x16xf32>
    %101 = vector.shape_cast %100 : vector<2x1x16xf32> to vector<2x1x16xf32>
    %102 = vector.broadcast %101 : vector<2x1x16xf32> to vector<2x16x16xf32>
    %103 = vector.shape_cast %102 : vector<2x16x16xf32> to vector<32x16xf32>
    %104 = vector.extract_strided_slice %99 {offsets = [0, 15, 0], sizes = [2, 1, 16], strides = [1, 1, 1]} : vector<2x16x16xf32> to vector<2x1x16xf32>
    %105 = vector.shape_cast %104 : vector<2x1x16xf32> to vector<2x1x16xf32>
    %106 = vector.broadcast %105 : vector<2x1x16xf32> to vector<2x16x16xf32>
    %107 = vector.shape_cast %106 : vector<2x16x16xf32> to vector<32x16xf32>
    %c5_i32_28 = arith.constant 5 : i32
    %108 = tpu.dynamic_rotate %96 by %c5_i32_28 dim 0 : vector<32x16xf32>, i32 -> vector<32x16xf32>
    %c5_i32_29 = arith.constant 5 : i32
    %109 = vector.broadcast %c5_i32_29 : i32 to vector<32x16xi32>
    %110 = arith.cmpi slt, %1, %109 : vector<32x16xi32>
    %111 = arith.select %110, %103, %108 : vector<32x16xi1>, vector<32x16xf32>
    %c4_i32_30 = arith.constant 4 : i32
    %112 = tpu.dynamic_rotate %96 by %c4_i32_30 dim 0 : vector<32x16xf32>, i32 -> vector<32x16xf32>
    %c4_i32_31 = arith.constant 4 : i32
    %113 = vector.broadcast %c4_i32_31 : i32 to vector<32x16xi32>
    %114 = arith.cmpi slt, %1, %113 : vector<32x16xi32>
    %115 = arith.select %114, %103, %112 : vector<32x16xi1>, vector<32x16xf32>
    %c3_i32_32 = arith.constant 3 : i32
    %116 = tpu.dynamic_rotate %96 by %c3_i32_32 dim 0 : vector<32x16xf32>, i32 -> vector<32x16xf32>
    %c3_i32_33 = arith.constant 3 : i32
    %117 = vector.broadcast %c3_i32_33 : i32 to vector<32x16xi32>
    %118 = arith.cmpi slt, %1, %117 : vector<32x16xi32>
    %119 = arith.select %118, %103, %116 : vector<32x16xi1>, vector<32x16xf32>
    %c2_i32_34 = arith.constant 2 : i32
    %120 = tpu.dynamic_rotate %96 by %c2_i32_34 dim 0 : vector<32x16xf32>, i32 -> vector<32x16xf32>
    %c2_i32_35 = arith.constant 2 : i32
    %121 = vector.broadcast %c2_i32_35 : i32 to vector<32x16xi32>
    %122 = arith.cmpi slt, %1, %121 : vector<32x16xi32>
    %123 = arith.select %122, %103, %120 : vector<32x16xi1>, vector<32x16xf32>
    %c1_i32_36 = arith.constant 1 : i32
    %124 = tpu.dynamic_rotate %96 by %c1_i32_36 dim 0 : vector<32x16xf32>, i32 -> vector<32x16xf32>
    %c1_i32_37 = arith.constant 1 : i32
    %125 = vector.broadcast %c1_i32_37 : i32 to vector<32x16xi32>
    %126 = arith.cmpi slt, %1, %125 : vector<32x16xi32>
    %127 = arith.select %126, %103, %124 : vector<32x16xi1>, vector<32x16xf32>
    %c31_i32_38 = arith.constant 31 : i32
    %128 = tpu.dynamic_rotate %96 by %c31_i32_38 dim 0 : vector<32x16xf32>, i32 -> vector<32x16xf32>
    %c15_i32_39 = arith.constant 15 : i32
    %129 = vector.broadcast %c15_i32_39 : i32 to vector<32x16xi32>
    %130 = arith.cmpi sge, %1, %129 : vector<32x16xi32>
    %131 = arith.select %130, %107, %128 : vector<32x16xi1>, vector<32x16xf32>
    %c30_i32_40 = arith.constant 30 : i32
    %132 = tpu.dynamic_rotate %96 by %c30_i32_40 dim 0 : vector<32x16xf32>, i32 -> vector<32x16xf32>
    %c14_i32_41 = arith.constant 14 : i32
    %133 = vector.broadcast %c14_i32_41 : i32 to vector<32x16xi32>
    %134 = arith.cmpi sge, %1, %133 : vector<32x16xi32>
    %135 = arith.select %134, %107, %132 : vector<32x16xi1>, vector<32x16xf32>
    %c29_i32_42 = arith.constant 29 : i32
    %136 = tpu.dynamic_rotate %96 by %c29_i32_42 dim 0 : vector<32x16xf32>, i32 -> vector<32x16xf32>
    %c13_i32_43 = arith.constant 13 : i32
    %137 = vector.broadcast %c13_i32_43 : i32 to vector<32x16xi32>
    %138 = arith.cmpi sge, %1, %137 : vector<32x16xi32>
    %139 = arith.select %138, %107, %136 : vector<32x16xi1>, vector<32x16xf32>
    %c28_i32_44 = arith.constant 28 : i32
    %140 = tpu.dynamic_rotate %96 by %c28_i32_44 dim 0 : vector<32x16xf32>, i32 -> vector<32x16xf32>
    %c12_i32_45 = arith.constant 12 : i32
    %141 = vector.broadcast %c12_i32_45 : i32 to vector<32x16xi32>
    %142 = arith.cmpi sge, %1, %141 : vector<32x16xi32>
    %143 = arith.select %142, %107, %140 : vector<32x16xi1>, vector<32x16xf32>
    %c27_i32_46 = arith.constant 27 : i32
    %144 = tpu.dynamic_rotate %96 by %c27_i32_46 dim 0 : vector<32x16xf32>, i32 -> vector<32x16xf32>
    %c11_i32_47 = arith.constant 11 : i32
    %145 = vector.broadcast %c11_i32_47 : i32 to vector<32x16xi32>
    %146 = arith.cmpi sge, %1, %145 : vector<32x16xi32>
    %147 = arith.select %146, %107, %144 : vector<32x16xi1>, vector<32x16xf32>
    %148 = tpu.concatenate %111, %115, %119, %123, %127, %96, %131, %135, %139, %143, %147 in 1 : vector<32x16xf32>, vector<32x16xf32>, vector<32x16xf32>, vector<32x16xf32>, vector<32x16xf32>, vector<32x16xf32>, vector<32x16xf32>, vector<32x16xf32>, vector<32x16xf32>, vector<32x16xf32>, vector<32x16xf32> -> vector<32x176xf32>
    %cst_48 = arith.constant dense<0.000000e+00> : vector<32x16xf32>
    %149 = tpu.matmul %148, %98, %cst_48 {dimension_numbers = #tpu.dot_dimension_numbers<[1], [0], [0], [1], [0, 0, 1, 1], [], []>} : vector<32x176xf32>, vector<176x16xf32>, vector<32x16xf32> -> vector<32x16xf32>
    %c0_49 = arith.constant 0 : index
    %c0_50 = arith.constant 0 : index
    %c0_51 = arith.constant 0 : index
    %150 = vector.load %arg6[%c0_49, %c0_50, %c0_51] : memref<2x1x16xf32, #tpu.memory_space<vmem>>, vector<1x1x16xf32>
    %151 = vector.shape_cast %150 : vector<1x1x16xf32> to vector<1x16xf32>
    %c0_52 = arith.constant 0 : index
    %c0_53 = arith.constant 0 : index
    %c0_54 = arith.constant 0 : index
    %152 = vector.load %arg7[%c0_52, %c0_53, %c0_54] : memref<2x1x16xf32, #tpu.memory_space<vmem>>, vector<1x1x16xf32>
    %153 = vector.shape_cast %152 : vector<1x1x16xf32> to vector<1x16xf32>
    %154 = vector.shape_cast %149 : vector<32x16xf32> to vector<2x16x16xf32>
    %cst_55 = arith.constant dense<0.000000e+00> : vector<2x16xf32>
    %155 = vector.multi_reduction <add>, %154, %cst_55 [1] : vector<2x16x16xf32> to vector<2x16xf32>
    %156 = vector.shape_cast %155 : vector<2x16xf32> to vector<2x1x16xf32>
    %157 = arith.mulf %154, %154 : vector<2x16x16xf32>
    %cst_56 = arith.constant dense<0.000000e+00> : vector<2x16xf32>
    %158 = vector.multi_reduction <add>, %157, %cst_56 [1] : vector<2x16x16xf32> to vector<2x16xf32>
    %159 = vector.shape_cast %158 : vector<2x16xf32> to vector<2x1x16xf32>
    %cst_57 = arith.constant 6.250000e-02 : f32
    %160 = vector.broadcast %cst_57 : f32 to vector<2x1x16xf32>
    %161 = arith.mulf %156, %160 : vector<2x1x16xf32>
    %cst_58 = arith.constant 6.250000e-02 : f32
    %162 = vector.broadcast %cst_58 : f32 to vector<2x1x16xf32>
    %163 = arith.mulf %159, %162 : vector<2x1x16xf32>
    %164 = arith.mulf %161, %161 : vector<2x1x16xf32>
    %165 = arith.subf %163, %164 : vector<2x1x16xf32>
    %cst_59 = arith.constant 0.000000e+00 : f32
    %166 = vector.broadcast %cst_59 : f32 to vector<2x1x16xf32>
    %167 = arith.maximumf %165, %166 : vector<2x1x16xf32>
    %cst_60 = arith.constant 9.99999974E-6 : f32
    %168 = vector.broadcast %cst_60 : f32 to vector<2x1x16xf32>
    %169 = arith.addf %167, %168 : vector<2x1x16xf32>
    %170 = math.rsqrt %169 : vector<2x1x16xf32>
    %171 = vector.broadcast %161 : vector<2x1x16xf32> to vector<2x16x16xf32>
    %172 = arith.subf %154, %171 : vector<2x16x16xf32>
    %173 = vector.broadcast %170 : vector<2x1x16xf32> to vector<2x16x16xf32>
    %174 = arith.mulf %172, %173 : vector<2x16x16xf32>
    %175 = vector.shape_cast %151 : vector<1x16xf32> to vector<1x1x16xf32>
    %176 = vector.broadcast %175 : vector<1x1x16xf32> to vector<2x16x16xf32>
    %177 = arith.mulf %174, %176 : vector<2x16x16xf32>
    %178 = vector.shape_cast %153 : vector<1x16xf32> to vector<1x1x16xf32>
    %179 = vector.broadcast %178 : vector<1x1x16xf32> to vector<2x16x16xf32>
    %180 = arith.addf %177, %179 : vector<2x16x16xf32>
    %181 = vector.shape_cast %180 : vector<2x16x16xf32> to vector<32x16xf32>
    %182 = arith.addf %3, %181 : vector<32x16xf32>
    %cst_61 = arith.constant 5.000000e-01 : f32
    %183 = vector.broadcast %cst_61 : f32 to vector<32x16xf32>
    %184 = arith.mulf %183, %182 : vector<32x16xf32>
    %cst_62 = arith.constant 0.707106769 : f32
    %185 = vector.broadcast %cst_62 : f32 to vector<32x16xf32>
    %186 = arith.mulf %182, %185 : vector<32x16xf32>
    %187 = math.erf %186 : vector<32x16xf32>
    %cst_63 = arith.constant 1.000000e+00 : f32
    %188 = vector.broadcast %cst_63 : f32 to vector<32x16xf32>
    %189 = arith.addf %188, %187 : vector<32x16xf32>
    %190 = arith.mulf %184, %189 : vector<32x16xf32>
    %c1 = arith.constant 1 : index
    %c0_64 = arith.constant 0 : index
    %c0_65 = arith.constant 0 : index
    %191 = vector.load %arg2[%c1, %c0_64, %c0_65] : memref<2x176x16xf32, #tpu.memory_space<vmem>>, vector<1x176x16xf32>
    %192 = vector.shape_cast %191 : vector<1x176x16xf32> to vector<176x16xf32>
    %193 = vector.shape_cast %190 : vector<32x16xf32> to vector<2x16x16xf32>
    %194 = vector.extract_strided_slice %193 {offsets = [0, 0, 0], sizes = [2, 1, 16], strides = [1, 1, 1]} : vector<2x16x16xf32> to vector<2x1x16xf32>
    %195 = vector.shape_cast %194 : vector<2x1x16xf32> to vector<2x1x16xf32>
    %196 = vector.broadcast %195 : vector<2x1x16xf32> to vector<2x16x16xf32>
    %197 = vector.shape_cast %196 : vector<2x16x16xf32> to vector<32x16xf32>
    %198 = vector.extract_strided_slice %193 {offsets = [0, 15, 0], sizes = [2, 1, 16], strides = [1, 1, 1]} : vector<2x16x16xf32> to vector<2x1x16xf32>
    %199 = vector.shape_cast %198 : vector<2x1x16xf32> to vector<2x1x16xf32>
    %200 = vector.broadcast %199 : vector<2x1x16xf32> to vector<2x16x16xf32>
    %201 = vector.shape_cast %200 : vector<2x16x16xf32> to vector<32x16xf32>
    %c5_i32_66 = arith.constant 5 : i32
    %202 = tpu.dynamic_rotate %190 by %c5_i32_66 dim 0 : vector<32x16xf32>, i32 -> vector<32x16xf32>
    %c5_i32_67 = arith.constant 5 : i32
    %203 = vector.broadcast %c5_i32_67 : i32 to vector<32x16xi32>
    %204 = arith.cmpi slt, %1, %203 : vector<32x16xi32>
    %205 = arith.select %204, %197, %202 : vector<32x16xi1>, vector<32x16xf32>
    %c4_i32_68 = arith.constant 4 : i32
    %206 = tpu.dynamic_rotate %190 by %c4_i32_68 dim 0 : vector<32x16xf32>, i32 -> vector<32x16xf32>
    %c4_i32_69 = arith.constant 4 : i32
    %207 = vector.broadcast %c4_i32_69 : i32 to vector<32x16xi32>
    %208 = arith.cmpi slt, %1, %207 : vector<32x16xi32>
    %209 = arith.select %208, %197, %206 : vector<32x16xi1>, vector<32x16xf32>
    %c3_i32_70 = arith.constant 3 : i32
    %210 = tpu.dynamic_rotate %190 by %c3_i32_70 dim 0 : vector<32x16xf32>, i32 -> vector<32x16xf32>
    %c3_i32_71 = arith.constant 3 : i32
    %211 = vector.broadcast %c3_i32_71 : i32 to vector<32x16xi32>
    %212 = arith.cmpi slt, %1, %211 : vector<32x16xi32>
    %213 = arith.select %212, %197, %210 : vector<32x16xi1>, vector<32x16xf32>
    %c2_i32_72 = arith.constant 2 : i32
    %214 = tpu.dynamic_rotate %190 by %c2_i32_72 dim 0 : vector<32x16xf32>, i32 -> vector<32x16xf32>
    %c2_i32_73 = arith.constant 2 : i32
    %215 = vector.broadcast %c2_i32_73 : i32 to vector<32x16xi32>
    %216 = arith.cmpi slt, %1, %215 : vector<32x16xi32>
    %217 = arith.select %216, %197, %214 : vector<32x16xi1>, vector<32x16xf32>
    %c1_i32_74 = arith.constant 1 : i32
    %218 = tpu.dynamic_rotate %190 by %c1_i32_74 dim 0 : vector<32x16xf32>, i32 -> vector<32x16xf32>
    %c1_i32_75 = arith.constant 1 : i32
    %219 = vector.broadcast %c1_i32_75 : i32 to vector<32x16xi32>
    %220 = arith.cmpi slt, %1, %219 : vector<32x16xi32>
    %221 = arith.select %220, %197, %218 : vector<32x16xi1>, vector<32x16xf32>
    %c31_i32_76 = arith.constant 31 : i32
    %222 = tpu.dynamic_rotate %190 by %c31_i32_76 dim 0 : vector<32x16xf32>, i32 -> vector<32x16xf32>
    %c15_i32_77 = arith.constant 15 : i32
    %223 = vector.broadcast %c15_i32_77 : i32 to vector<32x16xi32>
    %224 = arith.cmpi sge, %1, %223 : vector<32x16xi32>
    %225 = arith.select %224, %201, %222 : vector<32x16xi1>, vector<32x16xf32>
    %c30_i32_78 = arith.constant 30 : i32
    %226 = tpu.dynamic_rotate %190 by %c30_i32_78 dim 0 : vector<32x16xf32>, i32 -> vector<32x16xf32>
    %c14_i32_79 = arith.constant 14 : i32
    %227 = vector.broadcast %c14_i32_79 : i32 to vector<32x16xi32>
    %228 = arith.cmpi sge, %1, %227 : vector<32x16xi32>
    %229 = arith.select %228, %201, %226 : vector<32x16xi1>, vector<32x16xf32>
    %c29_i32_80 = arith.constant 29 : i32
    %230 = tpu.dynamic_rotate %190 by %c29_i32_80 dim 0 : vector<32x16xf32>, i32 -> vector<32x16xf32>
    %c13_i32_81 = arith.constant 13 : i32
    %231 = vector.broadcast %c13_i32_81 : i32 to vector<32x16xi32>
    %232 = arith.cmpi sge, %1, %231 : vector<32x16xi32>
    %233 = arith.select %232, %201, %230 : vector<32x16xi1>, vector<32x16xf32>
    %c28_i32_82 = arith.constant 28 : i32
    %234 = tpu.dynamic_rotate %190 by %c28_i32_82 dim 0 : vector<32x16xf32>, i32 -> vector<32x16xf32>
    %c12_i32_83 = arith.constant 12 : i32
    %235 = vector.broadcast %c12_i32_83 : i32 to vector<32x16xi32>
    %236 = arith.cmpi sge, %1, %235 : vector<32x16xi32>
    %237 = arith.select %236, %201, %234 : vector<32x16xi1>, vector<32x16xf32>
    %c27_i32_84 = arith.constant 27 : i32
    %238 = tpu.dynamic_rotate %190 by %c27_i32_84 dim 0 : vector<32x16xf32>, i32 -> vector<32x16xf32>
    %c11_i32_85 = arith.constant 11 : i32
    %239 = vector.broadcast %c11_i32_85 : i32 to vector<32x16xi32>
    %240 = arith.cmpi sge, %1, %239 : vector<32x16xi32>
    %241 = arith.select %240, %201, %238 : vector<32x16xi1>, vector<32x16xf32>
    %242 = tpu.concatenate %205, %209, %213, %217, %221, %190, %225, %229, %233, %237, %241 in 1 : vector<32x16xf32>, vector<32x16xf32>, vector<32x16xf32>, vector<32x16xf32>, vector<32x16xf32>, vector<32x16xf32>, vector<32x16xf32>, vector<32x16xf32>, vector<32x16xf32>, vector<32x16xf32>, vector<32x16xf32> -> vector<32x176xf32>
    %cst_86 = arith.constant dense<0.000000e+00> : vector<32x16xf32>
    %243 = tpu.matmul %242, %192, %cst_86 {dimension_numbers = #tpu.dot_dimension_numbers<[1], [0], [0], [1], [0, 0, 1, 1], [], []>} : vector<32x176xf32>, vector<176x16xf32>, vector<32x16xf32> -> vector<32x16xf32>
    %c1_87 = arith.constant 1 : index
    %c0_88 = arith.constant 0 : index
    %c0_89 = arith.constant 0 : index
    %244 = vector.load %arg3[%c1_87, %c0_88, %c0_89] : memref<2x1x16xf32, #tpu.memory_space<vmem>>, vector<1x1x16xf32>
    %245 = vector.shape_cast %244 : vector<1x1x16xf32> to vector<1x16xf32>
    %c1_90 = arith.constant 1 : index
    %c0_91 = arith.constant 0 : index
    %c0_92 = arith.constant 0 : index
    %246 = vector.load %arg4[%c1_90, %c0_91, %c0_92] : memref<2x1x16xf32, #tpu.memory_space<vmem>>, vector<1x1x16xf32>
    %247 = vector.shape_cast %246 : vector<1x1x16xf32> to vector<1x16xf32>
    %248 = vector.shape_cast %243 : vector<32x16xf32> to vector<2x16x16xf32>
    %cst_93 = arith.constant dense<0.000000e+00> : vector<2x16xf32>
    %249 = vector.multi_reduction <add>, %248, %cst_93 [1] : vector<2x16x16xf32> to vector<2x16xf32>
    %250 = vector.shape_cast %249 : vector<2x16xf32> to vector<2x1x16xf32>
    %251 = arith.mulf %248, %248 : vector<2x16x16xf32>
    %cst_94 = arith.constant dense<0.000000e+00> : vector<2x16xf32>
    %252 = vector.multi_reduction <add>, %251, %cst_94 [1] : vector<2x16x16xf32> to vector<2x16xf32>
    %253 = vector.shape_cast %252 : vector<2x16xf32> to vector<2x1x16xf32>
    %cst_95 = arith.constant 6.250000e-02 : f32
    %254 = vector.broadcast %cst_95 : f32 to vector<2x1x16xf32>
    %255 = arith.mulf %250, %254 : vector<2x1x16xf32>
    %cst_96 = arith.constant 6.250000e-02 : f32
    %256 = vector.broadcast %cst_96 : f32 to vector<2x1x16xf32>
    %257 = arith.mulf %253, %256 : vector<2x1x16xf32>
    %258 = arith.mulf %255, %255 : vector<2x1x16xf32>
    %259 = arith.subf %257, %258 : vector<2x1x16xf32>
    %cst_97 = arith.constant 0.000000e+00 : f32
    %260 = vector.broadcast %cst_97 : f32 to vector<2x1x16xf32>
    %261 = arith.maximumf %259, %260 : vector<2x1x16xf32>
    %cst_98 = arith.constant 9.99999974E-6 : f32
    %262 = vector.broadcast %cst_98 : f32 to vector<2x1x16xf32>
    %263 = arith.addf %261, %262 : vector<2x1x16xf32>
    %264 = math.rsqrt %263 : vector<2x1x16xf32>
    %265 = vector.broadcast %255 : vector<2x1x16xf32> to vector<2x16x16xf32>
    %266 = arith.subf %248, %265 : vector<2x16x16xf32>
    %267 = vector.broadcast %264 : vector<2x1x16xf32> to vector<2x16x16xf32>
    %268 = arith.mulf %266, %267 : vector<2x16x16xf32>
    %269 = vector.shape_cast %245 : vector<1x16xf32> to vector<1x1x16xf32>
    %270 = vector.broadcast %269 : vector<1x1x16xf32> to vector<2x16x16xf32>
    %271 = arith.mulf %268, %270 : vector<2x16x16xf32>
    %272 = vector.shape_cast %247 : vector<1x16xf32> to vector<1x1x16xf32>
    %273 = vector.broadcast %272 : vector<1x1x16xf32> to vector<2x16x16xf32>
    %274 = arith.addf %271, %273 : vector<2x16x16xf32>
    %275 = vector.shape_cast %274 : vector<2x16x16xf32> to vector<32x16xf32>
    %cst_99 = arith.constant 5.000000e-01 : f32
    %276 = vector.broadcast %cst_99 : f32 to vector<32x16xf32>
    %277 = arith.mulf %276, %275 : vector<32x16xf32>
    %cst_100 = arith.constant 0.707106769 : f32
    %278 = vector.broadcast %cst_100 : f32 to vector<32x16xf32>
    %279 = arith.mulf %275, %278 : vector<32x16xf32>
    %280 = math.erf %279 : vector<32x16xf32>
    %cst_101 = arith.constant 1.000000e+00 : f32
    %281 = vector.broadcast %cst_101 : f32 to vector<32x16xf32>
    %282 = arith.addf %281, %280 : vector<32x16xf32>
    %283 = arith.mulf %277, %282 : vector<32x16xf32>
    %c1_102 = arith.constant 1 : index
    %c0_103 = arith.constant 0 : index
    %c0_104 = arith.constant 0 : index
    %284 = vector.load %arg5[%c1_102, %c0_103, %c0_104] : memref<2x176x16xf32, #tpu.memory_space<vmem>>, vector<1x176x16xf32>
    %285 = vector.shape_cast %284 : vector<1x176x16xf32> to vector<176x16xf32>
    %286 = vector.shape_cast %283 : vector<32x16xf32> to vector<2x16x16xf32>
    %287 = vector.extract_strided_slice %286 {offsets = [0, 0, 0], sizes = [2, 1, 16], strides = [1, 1, 1]} : vector<2x16x16xf32> to vector<2x1x16xf32>
    %288 = vector.shape_cast %287 : vector<2x1x16xf32> to vector<2x1x16xf32>
    %289 = vector.broadcast %288 : vector<2x1x16xf32> to vector<2x16x16xf32>
    %290 = vector.shape_cast %289 : vector<2x16x16xf32> to vector<32x16xf32>
    %291 = vector.extract_strided_slice %286 {offsets = [0, 15, 0], sizes = [2, 1, 16], strides = [1, 1, 1]} : vector<2x16x16xf32> to vector<2x1x16xf32>
    %292 = vector.shape_cast %291 : vector<2x1x16xf32> to vector<2x1x16xf32>
    %293 = vector.broadcast %292 : vector<2x1x16xf32> to vector<2x16x16xf32>
    %294 = vector.shape_cast %293 : vector<2x16x16xf32> to vector<32x16xf32>
    %c5_i32_105 = arith.constant 5 : i32
    %295 = tpu.dynamic_rotate %283 by %c5_i32_105 dim 0 : vector<32x16xf32>, i32 -> vector<32x16xf32>
    %c5_i32_106 = arith.constant 5 : i32
    %296 = vector.broadcast %c5_i32_106 : i32 to vector<32x16xi32>
    %297 = arith.cmpi slt, %1, %296 : vector<32x16xi32>
    %298 = arith.select %297, %290, %295 : vector<32x16xi1>, vector<32x16xf32>
    %c4_i32_107 = arith.constant 4 : i32
    %299 = tpu.dynamic_rotate %283 by %c4_i32_107 dim 0 : vector<32x16xf32>, i32 -> vector<32x16xf32>
    %c4_i32_108 = arith.constant 4 : i32
    %300 = vector.broadcast %c4_i32_108 : i32 to vector<32x16xi32>
    %301 = arith.cmpi slt, %1, %300 : vector<32x16xi32>
    %302 = arith.select %301, %290, %299 : vector<32x16xi1>, vector<32x16xf32>
    %c3_i32_109 = arith.constant 3 : i32
    %303 = tpu.dynamic_rotate %283 by %c3_i32_109 dim 0 : vector<32x16xf32>, i32 -> vector<32x16xf32>
    %c3_i32_110 = arith.constant 3 : i32
    %304 = vector.broadcast %c3_i32_110 : i32 to vector<32x16xi32>
    %305 = arith.cmpi slt, %1, %304 : vector<32x16xi32>
    %306 = arith.select %305, %290, %303 : vector<32x16xi1>, vector<32x16xf32>
    %c2_i32_111 = arith.constant 2 : i32
    %307 = tpu.dynamic_rotate %283 by %c2_i32_111 dim 0 : vector<32x16xf32>, i32 -> vector<32x16xf32>
    %c2_i32_112 = arith.constant 2 : i32
    %308 = vector.broadcast %c2_i32_112 : i32 to vector<32x16xi32>
    %309 = arith.cmpi slt, %1, %308 : vector<32x16xi32>
    %310 = arith.select %309, %290, %307 : vector<32x16xi1>, vector<32x16xf32>
    %c1_i32_113 = arith.constant 1 : i32
    %311 = tpu.dynamic_rotate %283 by %c1_i32_113 dim 0 : vector<32x16xf32>, i32 -> vector<32x16xf32>
    %c1_i32_114 = arith.constant 1 : i32
    %312 = vector.broadcast %c1_i32_114 : i32 to vector<32x16xi32>
    %313 = arith.cmpi slt, %1, %312 : vector<32x16xi32>
    %314 = arith.select %313, %290, %311 : vector<32x16xi1>, vector<32x16xf32>
    %c31_i32_115 = arith.constant 31 : i32
    %315 = tpu.dynamic_rotate %283 by %c31_i32_115 dim 0 : vector<32x16xf32>, i32 -> vector<32x16xf32>
    %c15_i32_116 = arith.constant 15 : i32
    %316 = vector.broadcast %c15_i32_116 : i32 to vector<32x16xi32>
    %317 = arith.cmpi sge, %1, %316 : vector<32x16xi32>
    %318 = arith.select %317, %294, %315 : vector<32x16xi1>, vector<32x16xf32>
    %c30_i32_117 = arith.constant 30 : i32
    %319 = tpu.dynamic_rotate %283 by %c30_i32_117 dim 0 : vector<32x16xf32>, i32 -> vector<32x16xf32>
    %c14_i32_118 = arith.constant 14 : i32
    %320 = vector.broadcast %c14_i32_118 : i32 to vector<32x16xi32>
    %321 = arith.cmpi sge, %1, %320 : vector<32x16xi32>
    %322 = arith.select %321, %294, %319 : vector<32x16xi1>, vector<32x16xf32>
    %c29_i32_119 = arith.constant 29 : i32
    %323 = tpu.dynamic_rotate %283 by %c29_i32_119 dim 0 : vector<32x16xf32>, i32 -> vector<32x16xf32>
    %c13_i32_120 = arith.constant 13 : i32
    %324 = vector.broadcast %c13_i32_120 : i32 to vector<32x16xi32>
    %325 = arith.cmpi sge, %1, %324 : vector<32x16xi32>
    %326 = arith.select %325, %294, %323 : vector<32x16xi1>, vector<32x16xf32>
    %c28_i32_121 = arith.constant 28 : i32
    %327 = tpu.dynamic_rotate %283 by %c28_i32_121 dim 0 : vector<32x16xf32>, i32 -> vector<32x16xf32>
    %c12_i32_122 = arith.constant 12 : i32
    %328 = vector.broadcast %c12_i32_122 : i32 to vector<32x16xi32>
    %329 = arith.cmpi sge, %1, %328 : vector<32x16xi32>
    %330 = arith.select %329, %294, %327 : vector<32x16xi1>, vector<32x16xf32>
    %c27_i32_123 = arith.constant 27 : i32
    %331 = tpu.dynamic_rotate %283 by %c27_i32_123 dim 0 : vector<32x16xf32>, i32 -> vector<32x16xf32>
    %c11_i32_124 = arith.constant 11 : i32
    %332 = vector.broadcast %c11_i32_124 : i32 to vector<32x16xi32>
    %333 = arith.cmpi sge, %1, %332 : vector<32x16xi32>
    %334 = arith.select %333, %294, %331 : vector<32x16xi1>, vector<32x16xf32>
    %335 = tpu.concatenate %298, %302, %306, %310, %314, %283, %318, %322, %326, %330, %334 in 1 : vector<32x16xf32>, vector<32x16xf32>, vector<32x16xf32>, vector<32x16xf32>, vector<32x16xf32>, vector<32x16xf32>, vector<32x16xf32>, vector<32x16xf32>, vector<32x16xf32>, vector<32x16xf32>, vector<32x16xf32> -> vector<32x176xf32>
    %cst_125 = arith.constant dense<0.000000e+00> : vector<32x16xf32>
    %336 = tpu.matmul %335, %285, %cst_125 {dimension_numbers = #tpu.dot_dimension_numbers<[1], [0], [0], [1], [0, 0, 1, 1], [], []>} : vector<32x176xf32>, vector<176x16xf32>, vector<32x16xf32> -> vector<32x16xf32>
    %c1_126 = arith.constant 1 : index
    %c0_127 = arith.constant 0 : index
    %c0_128 = arith.constant 0 : index
    %337 = vector.load %arg6[%c1_126, %c0_127, %c0_128] : memref<2x1x16xf32, #tpu.memory_space<vmem>>, vector<1x1x16xf32>
    %338 = vector.shape_cast %337 : vector<1x1x16xf32> to vector<1x16xf32>
    %c1_129 = arith.constant 1 : index
    %c0_130 = arith.constant 0 : index
    %c0_131 = arith.constant 0 : index
    %339 = vector.load %arg7[%c1_129, %c0_130, %c0_131] : memref<2x1x16xf32, #tpu.memory_space<vmem>>, vector<1x1x16xf32>
    %340 = vector.shape_cast %339 : vector<1x1x16xf32> to vector<1x16xf32>
    %341 = vector.shape_cast %336 : vector<32x16xf32> to vector<2x16x16xf32>
    %cst_132 = arith.constant dense<0.000000e+00> : vector<2x16xf32>
    %342 = vector.multi_reduction <add>, %341, %cst_132 [1] : vector<2x16x16xf32> to vector<2x16xf32>
    %343 = vector.shape_cast %342 : vector<2x16xf32> to vector<2x1x16xf32>
    %344 = arith.mulf %341, %341 : vector<2x16x16xf32>
    %cst_133 = arith.constant dense<0.000000e+00> : vector<2x16xf32>
    %345 = vector.multi_reduction <add>, %344, %cst_133 [1] : vector<2x16x16xf32> to vector<2x16xf32>
    %346 = vector.shape_cast %345 : vector<2x16xf32> to vector<2x1x16xf32>
    %cst_134 = arith.constant 6.250000e-02 : f32
    %347 = vector.broadcast %cst_134 : f32 to vector<2x1x16xf32>
    %348 = arith.mulf %343, %347 : vector<2x1x16xf32>
    %cst_135 = arith.constant 6.250000e-02 : f32
    %349 = vector.broadcast %cst_135 : f32 to vector<2x1x16xf32>
    %350 = arith.mulf %346, %349 : vector<2x1x16xf32>
    %351 = arith.mulf %348, %348 : vector<2x1x16xf32>
    %352 = arith.subf %350, %351 : vector<2x1x16xf32>
    %cst_136 = arith.constant 0.000000e+00 : f32
    %353 = vector.broadcast %cst_136 : f32 to vector<2x1x16xf32>
    %354 = arith.maximumf %352, %353 : vector<2x1x16xf32>
    %cst_137 = arith.constant 9.99999974E-6 : f32
    %355 = vector.broadcast %cst_137 : f32 to vector<2x1x16xf32>
    %356 = arith.addf %354, %355 : vector<2x1x16xf32>
    %357 = math.rsqrt %356 : vector<2x1x16xf32>
    %358 = vector.broadcast %348 : vector<2x1x16xf32> to vector<2x16x16xf32>
    %359 = arith.subf %341, %358 : vector<2x16x16xf32>
    %360 = vector.broadcast %357 : vector<2x1x16xf32> to vector<2x16x16xf32>
    %361 = arith.mulf %359, %360 : vector<2x16x16xf32>
    %362 = vector.shape_cast %338 : vector<1x16xf32> to vector<1x1x16xf32>
    %363 = vector.broadcast %362 : vector<1x1x16xf32> to vector<2x16x16xf32>
    %364 = arith.mulf %361, %363 : vector<2x16x16xf32>
    %365 = vector.shape_cast %340 : vector<1x16xf32> to vector<1x1x16xf32>
    %366 = vector.broadcast %365 : vector<1x1x16xf32> to vector<2x16x16xf32>
    %367 = arith.addf %364, %366 : vector<2x16x16xf32>
    %368 = vector.shape_cast %367 : vector<2x16x16xf32> to vector<32x16xf32>
    %369 = arith.addf %190, %368 : vector<32x16xf32>
    %cst_138 = arith.constant 5.000000e-01 : f32
    %370 = vector.broadcast %cst_138 : f32 to vector<32x16xf32>
    %371 = arith.mulf %370, %369 : vector<32x16xf32>
    %cst_139 = arith.constant 0.707106769 : f32
    %372 = vector.broadcast %cst_139 : f32 to vector<32x16xf32>
    %373 = arith.mulf %369, %372 : vector<32x16xf32>
    %374 = math.erf %373 : vector<32x16xf32>
    %cst_140 = arith.constant 1.000000e+00 : f32
    %375 = vector.broadcast %cst_140 : f32 to vector<32x16xf32>
    %376 = arith.addf %375, %374 : vector<32x16xf32>
    %377 = arith.mulf %371, %376 : vector<32x16xf32>
    %378 = vector.shape_cast %377 : vector<32x16xf32> to vector<2x16x16xf32>
    %c0_141 = arith.constant 0 : index
    %c0_142 = arith.constant 0 : index
    %c0_143 = arith.constant 0 : index
    %379 = vector.load %arg8[%c0_141, %c0_142, %c0_143] : memref<2x16x16xf32, #tpu.memory_space<vmem>>, vector<2x16x16xf32>
    tpu.vector_store %arg8[%c0_141, %c0_142, %c0_143], %378 {strides = array<i32>} : memref<2x16x16xf32, #tpu.memory_space<vmem>>, vector<2x16x16xf32>,
    return
  }
  func.func @transform_0(%arg0: i32) -> (i32, i32, i32) {
    %c0_i32 = arith.constant 0 : i32
    %c0_i32_0 = arith.constant 0 : i32
    %c0_i32_1 = arith.constant 0 : i32
    return %arg0, %c0_i32, %c0_i32_0 : i32, i32, i32
  }
  func.func @transform_1(%arg0: i32) -> (i32, i32, i32) {
    %c0_i32 = arith.constant 0 : i32
    %c0_i32_0 = arith.constant 0 : i32
    %c0_i32_1 = arith.constant 0 : i32
    %c0_i32_2 = arith.constant 0 : i32
    return %c0_i32, %c0_i32_0, %c0_i32_1 : i32, i32, i32
  }
  func.func @transform_2(%arg0: i32) -> (i32, i32, i32) {
    %c0_i32 = arith.constant 0 : i32
    %c0_i32_0 = arith.constant 0 : i32
    %c0_i32_1 = arith.constant 0 : i32
    %c0_i32_2 = arith.constant 0 : i32
    return %c0_i32, %c0_i32_0, %c0_i32_1 : i32, i32, i32
  }
  func.func @transform_3(%arg0: i32) -> (i32, i32, i32) {
    %c0_i32 = arith.constant 0 : i32
    %c0_i32_0 = arith.constant 0 : i32
    %c0_i32_1 = arith.constant 0 : i32
    %c0_i32_2 = arith.constant 0 : i32
    return %c0_i32, %c0_i32_0, %c0_i32_1 : i32, i32, i32
  }
  func.func @transform_4(%arg0: i32) -> (i32, i32, i32) {
    %c0_i32 = arith.constant 0 : i32
    %c0_i32_0 = arith.constant 0 : i32
    %c0_i32_1 = arith.constant 0 : i32
    %c0_i32_2 = arith.constant 0 : i32
    return %c0_i32, %c0_i32_0, %c0_i32_1 : i32, i32, i32
  }
  func.func @transform_5(%arg0: i32) -> (i32, i32, i32) {
    %c0_i32 = arith.constant 0 : i32
    %c0_i32_0 = arith.constant 0 : i32
    %c0_i32_1 = arith.constant 0 : i32
    %c0_i32_2 = arith.constant 0 : i32
    return %c0_i32, %c0_i32_0, %c0_i32_1 : i32, i32, i32
  }
  func.func @transform_6(%arg0: i32) -> (i32, i32, i32) {
    %c0_i32 = arith.constant 0 : i32
    %c0_i32_0 = arith.constant 0 : i32
    %c0_i32_1 = arith.constant 0 : i32
    %c0_i32_2 = arith.constant 0 : i32
    return %c0_i32, %c0_i32_0, %c0_i32_1 : i32, i32, i32
  }
  func.func @transform_7(%arg0: i32) -> (i32, i32, i32) {
    %c0_i32 = arith.constant 0 : i32
    %c0_i32_0 = arith.constant 0 : i32
    %c0_i32_1 = arith.constant 0 : i32
    return %arg0, %c0_i32, %c0_i32_0 : i32, i32, i32
  }
}

</mosaic_0001>

<llo_original>
// kernel: tpu_custom_call.1
$region0: #{tpu_custom_call.1}
  #allocation0 [shape = 'u32[]', space=smem, size = 0x4, offset = 0x4, fixed_abs, tag = 'smem constant byte address 0x4 - core index']
  #allocation1 [shape = 'u32[72,128]{1,0:T(1,128)}', space=vmem, size = 0x9000, scoped, tag = 'internal scratch']
  %s0 = inlined_call_operand.vmem [shape: f32[2,16,16], index: 0, kind: input, shape index: {}]
  %s1 = inlined_call_operand.vmem [shape: f32[2,176,16], index: 1, kind: input, shape index: {}]
  %s2 = inlined_call_operand.vmem [shape: f32[2,1,16], index: 2, kind: input, shape index: {}]
  %s3 = inlined_call_operand.vmem [shape: f32[2,1,16], index: 3, kind: input, shape index: {}]
  %s4 = inlined_call_operand.vmem [shape: f32[2,176,16], index: 4, kind: input, shape index: {}]
  %s5 = inlined_call_operand.vmem [shape: f32[2,1,16], index: 5, kind: input, shape index: {}]
  %s6 = inlined_call_operand.vmem [shape: f32[2,1,16], index: 6, kind: input, shape index: {}]
  %s7 = inlined_call_operand.hbm [shape: f32[2,16,16], index: 7, kind: output, shape index: {}]
  %s8 = sld [smem:[#allocation0]]
  $region38: #{tpu_custom_call.1} parent=0
    _
  %s10 = ssub.s32 1, %s8
  %s11 = scalar_select 0, %s10, %s8
  $region1: #{tpu_custom_call.1} parent=0
    #allocation2 [shape = 'u8[16384]{0}', space=vmem, size = 0x4000, scoped, tag = 'output window, operand 0, single buffered']
    #allocation3 [shape = 's32[1]{0}', space=sflag, size = 0x4, scoped, tag = 'scoped memory for tpu_custom_call.1']
    %12 = vsyncpa [#allocation3], 0
    // Predicated region
    $region2: #{tpu_custom_call.1} parent=1 // pred_check
      _
    $region3: #{tpu_custom_call.1} parent=1 // pred_check_branch
      %14 = sbr.rel (0) target = $region5
    $region4: #{tpu_custom_call.1} parent=1 // pred_region
      _
    $region5: #{tpu_custom_call.1} parent=1 // pred_fallthru
      _
    // Predicated region
    $region6: #{tpu_custom_call.1} parent=1 // pred_check
      _
    $region7: #{tpu_custom_call.1} parent=1 // pred_check_branch
      %16 = sbr.rel (0) target = $region9
    $region8: #{tpu_custom_call.1} parent=1 // pred_region
      _
    $region9: #{tpu_custom_call.1} parent=1 // pred_fallthru
      _
    // Predicated region
    $region10: #{tpu_custom_call.1} parent=1 // pred_check
      _
    $region11: #{tpu_custom_call.1} parent=1 // pred_check_branch
      %18 = sbr.rel (0) target = $region13
    $region12: #{tpu_custom_call.1} parent=1 // pred_region
      _
    $region13: #{tpu_custom_call.1} parent=1 // pred_fallthru
      _
    // Predicated region
    $region14: #{tpu_custom_call.1} parent=1 // pred_check
      _
    $region15: #{tpu_custom_call.1} parent=1 // pred_check_branch
      %20 = sbr.rel (0) target = $region17
    $region16: #{tpu_custom_call.1} parent=1 // pred_region
      _
    $region17: #{tpu_custom_call.1} parent=1 // pred_fallthru
      _
    // Predicated region
    $region18: #{tpu_custom_call.1} parent=1 // pred_check
      _
    $region19: #{tpu_custom_call.1} parent=1 // pred_check_branch
      %22 = sbr.rel (0) target = $region21
    $region20: #{tpu_custom_call.1} parent=1 // pred_region
      _
    $region21: #{tpu_custom_call.1} parent=1 // pred_fallthru
      _
    // Predicated region
    $region22: #{tpu_custom_call.1} parent=1 // pred_check
      _
    $region23: #{tpu_custom_call.1} parent=1 // pred_check_branch
      %24 = sbr.rel (0) target = $region25
    $region24: #{tpu_custom_call.1} parent=1 // pred_region
      _
    $region25: #{tpu_custom_call.1} parent=1 // pred_fallthru
      _
    // Predicated region
    $region26: #{tpu_custom_call.1} parent=1 // pred_check
      _
    $region27: #{tpu_custom_call.1} parent=1 // pred_check_branch
      %26 = sbr.rel (0) target = $region29
    $region28: #{tpu_custom_call.1} parent=1 // pred_region
      _
    $region29: #{tpu_custom_call.1} parent=1 // pred_fallthru
      _
    %v27 = vlaneseq
    %v28 = vshrl.u32 %v27, 7
    %v29 = vadd.s32 %v28, 8
    %v30 = vld [vmem:[%s0] sm:$0xff]
    %v31 = vld [vmem:[%s0 + $0x8] sm:$0xff]
    %v32 = vld [vmem:[%s0 + $0x10] sm:$0xff]
    %v33 = vld [vmem:[%s0 + $0x18] sm:$0xff]
    %v34 = vld [vmem:[%s1] sm:$0xff]
    %v35 = vld [vmem:[%s1 + $0x8] sm:$0xff]
    %v36 = vld [vmem:[%s1 + $0x10] sm:$0xff]
    %v37 = vld [vmem:[%s1 + $0x18] sm:$0xff]
    %v38 = vld [vmem:[%s1 + $0x20] sm:$0xff]
    %v39 = vld [vmem:[%s1 + $0x28] sm:$0xff]
    %v40 = vld [vmem:[%s1 + $0x30] sm:$0xff]
    %v41 = vld [vmem:[%s1 + $0x38] sm:$0xff]
    %v42 = vld [vmem:[%s1 + $0x40] sm:$0xff]
    %v43 = vld [vmem:[%s1 + $0x48] sm:$0xff]
    %v44 = vld [vmem:[%s1 + $0x50] sm:$0xff]
    %v45 = vld [vmem:[%s1 + $0x58] sm:$0xff]
    %v46 = vld [vmem:[%s1 + $0x60] sm:$0xff]
    %v47 = vld [vmem:[%s1 + $0x68] sm:$0xff]
    %v48 = vld [vmem:[%s1 + $0x70] sm:$0xff]
    %v49 = vld [vmem:[%s1 + $0x78] sm:$0xff]
    %v50 = vld [vmem:[%s1 + $0x80] sm:$0xff]
    %v51 = vld [vmem:[%s1 + $0x88] sm:$0xff]
    %v52 = vld [vmem:[%s1 + $0x90] sm:$0xff]
    %v53 = vld [vmem:[%s1 + $0x98] sm:$0xff]
    %v54 = vld [vmem:[%s1 + $0xa0] sm:$0xff]
    %v55 = vld [vmem:[%s1 + $0xa8] sm:$0xff]
    %v56 = vperm.slane %v30, 0
    %v57 = vperm.slane %v32, 0
    %v58 = vperm.slane %v31, 7
    %v59 = vperm.slane %v33, 7
    %v60 = vrot.slane %v30, 3
    %v61 = vrot.slane %v31, 3
    %v62 = vrot.slane %v32, 3
    %v63 = vrot.slane %v33, 3
    %vm64 = vcmp.lt.s32.totalorder %v28, 5
    %v65 = vsel %vm64, %v62, %v63
    %v66 = vsel %vm64, %v61, %v62
    %v67 = vsel %vm64, %v60, %v61
    %v68 = vsel %vm64, %v63, %v60
    %vm69 = vcmp.lt.s32.totalorder %v29, 5
    %v70 = vsel %vm64, %v56, %v68
    %v71 = vsel %vm69, %v56, %v67
    %v72 = vsel %vm64, %v57, %v66
    %v73 = vsel %vm69, %v57, %v65
    %v74 = vrot.slane %v30, 4
    %v75 = vrot.slane %v31, 4
    %v76 = vrot.slane %v32, 4
    %v77 = vrot.slane %v33, 4
    %vm78 = vcmp.lt.s32.totalorder %v28, 4
    %v79 = vsel %vm78, %v76, %v77
    %v80 = vsel %vm78, %v75, %v76
    %v81 = vsel %vm78, %v74, %v75
    %v82 = vsel %vm78, %v77, %v74
    %vm83 = vcmp.lt.s32.totalorder %v29, 4
    %v84 = vsel %vm78, %v56, %v82
    %v85 = vsel %vm83, %v56, %v81
    %v86 = vsel %vm78, %v57, %v80
    %v87 = vsel %vm83, %v57, %v79
    %v88 = vrot.slane %v30, 5
    %v89 = vrot.slane %v31, 5
    %v90 = vrot.slane %v32, 5
    %v91 = vrot.slane %v33, 5
    %vm92 = vcmp.lt.s32.totalorder %v28, 3
    %v93 = vsel %vm92, %v90, %v91
    %v94 = vsel %vm92, %v89, %v90
    %v95 = vsel %vm92, %v88, %v89
    %v96 = vsel %vm92, %v91, %v88
    %vm97 = vcmp.lt.s32.totalorder %v29, 3
    %v98 = vsel %vm92, %v56, %v96
    %v99 = vsel %vm97, %v56, %v95
    %v100 = vsel %vm92, %v57, %v94
    %v101 = vsel %vm97, %v57, %v93
    %v102 = vrot.slane %v30, 6
    %v103 = vrot.slane %v31, 6
    %v104 = vrot.slane %v32, 6
    %v105 = vrot.slane %v33, 6
    %vm106 = vcmp.lt.s32.totalorder %v28, 2
    %v107 = vsel %vm106, %v104, %v105
    %v108 = vsel %vm106, %v103, %v104
    %v109 = vsel %vm106, %v102, %v103
    %v110 = vsel %vm106, %v105, %v102
    %vm111 = vcmp.lt.s32.totalorder %v29, 2
    %v112 = vsel %vm106, %v56, %v110
    %v113 = vsel %vm111, %v56, %v109
    %v114 = vsel %vm106, %v57, %v108
    %v115 = vsel %vm111, %v57, %v107
    %v116 = vrot.slane %v30, 7
    %v117 = vrot.slane %v31, 7
    %v118 = vrot.slane %v32, 7
    %v119 = vrot.slane %v33, 7
    %vm120 = vcmp.lt.s32.totalorder %v28, 1
    %v121 = vsel %vm120, %v118, %v119
    %v122 = vsel %vm120, %v117, %v118
    %v123 = vsel %vm120, %v116, %v117
    %v124 = vsel %vm120, %v119, %v116
    %vm125 = vcmp.lt.s32.totalorder %v29, 1
    %v126 = vsel %vm120, %v56, %v124
    %v127 = vsel %vm125, %v56, %v123
    %v128 = vsel %vm120, %v57, %v122
    %v129 = vsel %vm125, %v57, %v121
    %v130 = vrot.slane %v30, 1
    %v131 = vrot.slane %v31, 1
    %v132 = vrot.slane %v32, 1
    %v133 = vrot.slane %v33, 1
    %vm134 = vcmp.lt.s32.totalorder %v28, 7
    %v135 = vsel %vm134, %v132, %v133
    %v136 = vsel %vm134, %v131, %v132
    %v137 = vsel %vm134, %v130, %v131
    %v138 = vsel %vm134, %v133, %v130
    %vm139 = vcmp.ge.s32.totalorder %v28, 15
    %vm140 = vcmp.ge.s32.totalorder %v29, 15
    %v141 = vsel %vm139, %v58, %v137
    %v142 = vsel %vm140, %v58, %v136
    %v143 = vsel %vm139, %v59, %v135
    %v144 = vsel %vm140, %v59, %v138
    %v145 = vrot.slane %v30, 2
    %v146 = vrot.slane %v31, 2
    %v147 = vrot.slane %v32, 2
    %v148 = vrot.slane %v33, 2
    %vm149 = vcmp.lt.s32.totalorder %v28, 6
    %v150 = vsel %vm149, %v147, %v148
    %v151 = vsel %vm149, %v146, %v147
    %v152 = vsel %vm149, %v145, %v146
    %v153 = vsel %vm149, %v148, %v145
    %vm154 = vcmp.ge.s32.totalorder %v28, 14
    %vm155 = vcmp.ge.s32.totalorder %v29, 14
    %v156 = vsel %vm154, %v58, %v152
    %v157 = vsel %vm155, %v58, %v151
    %v158 = vsel %vm154, %v59, %v150
    %v159 = vsel %vm155, %v59, %v153
    %vm160 = vcmp.ge.s32.totalorder %v28, 13
    %vm161 = vcmp.ge.s32.totalorder %v29, 13
    %v162 = vsel %vm160, %v58, %v67
    %v163 = vsel %vm161, %v58, %v66
    %v164 = vsel %vm160, %v59, %v65
    %v165 = vsel %vm161, %v59, %v68
    %vm166 = vcmp.ge.s32.totalorder %v28, 12
    %vm167 = vcmp.ge.s32.totalorder %v29, 12
    %v168 = vsel %vm166, %v58, %v81
    %v169 = vsel %vm167, %v58, %v80
    %v170 = vsel %vm166, %v59, %v79
    %v171 = vsel %vm167, %v59, %v82
    %vm172 = vcmp.ge.s32.totalorder %v28, 11
    %vm173 = vcmp.ge.s32.totalorder %v29, 11
    %v174 = vsel %vm172, %v58, %v95
    %v175 = vsel %vm173, %v58, %v94
    %v176 = vsel %vm172, %v59, %v93
    %v177 = vsel %vm173, %v59, %v96
    %182 = vrot.lane.b32.xlu0 %v84, 16
    %v183 = vpop.permute.xlu0 %182
    %184 = vrot.lane.b32.xlu0 %v85, 16
    %v185 = vpop.permute.xlu0 %184
    %186 = vrot.lane.b32.xlu0 %v86, 16
    %v187 = vpop.permute.xlu0 %186
    %188 = vrot.lane.b32.xlu0 %v87, 16
    %v189 = vpop.permute.xlu0 %188
    %198 = vrot.lane.b32.xlu0 %v98, 32
    %v199 = vpop.permute.xlu0 %198
    %200 = vrot.lane.b32.xlu0 %v99, 32
    %v201 = vpop.permute.xlu0 %200
    %202 = vrot.lane.b32.xlu0 %v100, 32
    %v203 = vpop.permute.xlu0 %202
    %204 = vrot.lane.b32.xlu0 %v101, 32
    %v205 = vpop.permute.xlu0 %204
    %214 = vrot.lane.b32.xlu0 %v112, 48
    %v215 = vpop.permute.xlu0 %214
    %216 = vrot.lane.b32.xlu0 %v113, 48
    %v217 = vpop.permute.xlu0 %216
    %218 = vrot.lane.b32.xlu0 %v114, 48
    %v219 = vpop.permute.xlu0 %218
    %220 = vrot.lane.b32.xlu0 %v115, 48
    %v221 = vpop.permute.xlu0 %220
    %230 = vrot.lane.b32.xlu0 %v126, 64
    %v231 = vpop.permute.xlu0 %230
    %232 = vrot.lane.b32.xlu0 %v127, 64
    %v233 = vpop.permute.xlu0 %232
    %234 = vrot.lane.b32.xlu0 %v128, 64
    %v235 = vpop.permute.xlu0 %234
    %236 = vrot.lane.b32.xlu0 %v129, 64
    %v237 = vpop.permute.xlu0 %236
    %246 = vrot.lane.b32.xlu0 %v30, 80
    %v247 = vpop.permute.xlu0 %246
    %248 = vrot.lane.b32.xlu0 %v31, 80
    %v249 = vpop.permute.xlu0 %248
    %250 = vrot.lane.b32.xlu0 %v32, 80
    %v251 = vpop.permute.xlu0 %250
    %252 = vrot.lane.b32.xlu0 %v33, 80
    %v253 = vpop.permute.xlu0 %252
    %262 = vrot.lane.b32.xlu0 %v141, 96
    %v263 = vpop.permute.xlu0 %262
    %264 = vrot.lane.b32.xlu0 %v142, 96
    %v265 = vpop.permute.xlu0 %264
    %266 = vrot.lane.b32.xlu0 %v143, 96
    %v267 = vpop.permute.xlu0 %266
    %268 = vrot.lane.b32.xlu0 %v144, 96
    %v269 = vpop.permute.xlu0 %268
    %278 = vrot.lane.b32.xlu0 %v156, 112
    %v279 = vpop.permute.xlu0 %278
    %280 = vrot.lane.b32.xlu0 %v157, 112
    %v281 = vpop.permute.xlu0 %280
    %282 = vrot.lane.b32.xlu0 %v158, 112
    %v283 = vpop.permute.xlu0 %282
    %284 = vrot.lane.b32.xlu0 %v159, 112
    %v285 = vpop.permute.xlu0 %284
    %294 = vrot.lane.b32.xlu0 %v168, 16
    %v295 = vpop.permute.xlu0 %294
    %296 = vrot.lane.b32.xlu0 %v169, 16
    %v297 = vpop.permute.xlu0 %296
    %298 = vrot.lane.b32.xlu0 %v170, 16
    %v299 = vpop.permute.xlu0 %298
    %300 = vrot.lane.b32.xlu0 %v171, 16
    %v301 = vpop.permute.xlu0 %300
    %310 = vrot.lane.b32.xlu0 %v174, 32
    %v311 = vpop.permute.xlu0 %310
    %312 = vrot.lane.b32.xlu0 %v175, 32
    %v313 = vpop.permute.xlu0 %312
    %314 = vrot.lane.b32.xlu0 %v176, 32
    %v315 = vpop.permute.xlu0 %314
    %316 = vrot.lane.b32.xlu0 %v177, 32
    %v317 = vpop.permute.xlu0 %316
    %vm322 = vcmask 130048
    %v323 = vsel %vm322, %v70, %v183
    %v324 = vsel %vm322, %v71, %v185
    %v325 = vsel %vm322, %v72, %v187
    %v326 = vsel %vm322, %v73, %v189
    %vm327 = vcmask 261120
    %v328 = vsel %vm327, %v323, %v199
    %v329 = vsel %vm327, %v324, %v201
    %v330 = vsel %vm327, %v325, %v203
    %v331 = vsel %vm327, %v326, %v205
    %vm332 = vcmask 392192
    %v333 = vsel %vm332, %v328, %v215
    %v334 = vsel %vm332, %v329, %v217
    %v335 = vsel %vm332, %v330, %v219
    %v336 = vsel %vm332, %v331, %v221
    %vm337 = vcmask 523264
    %v338 = vsel %vm337, %v333, %v231
    %v339 = vsel %vm337, %v334, %v233
    %v340 = vsel %vm337, %v335, %v235
    %v341 = vsel %vm337, %v336, %v237
    %vm342 = vcmask 654336
    %v343 = vsel %vm342, %v338, %v247
    %v344 = vsel %vm342, %v339, %v249
    %v345 = vsel %vm342, %v340, %v251
    %v346 = vsel %vm342, %v341, %v253
    %vm347 = vcmask 785408
    %v348 = vsel %vm347, %v343, %v263
    %v349 = vsel %vm347, %v344, %v265
    %v350 = vsel %vm347, %v345, %v267
    %v351 = vsel %vm347, %v346, %v269
    %vm352 = vcmask 916480
    %v353 = vsel %vm352, %v348, %v279
    %v354 = vsel %vm352, %v349, %v281
    %v355 = vsel %vm352, %v350, %v283
    %v356 = vsel %vm352, %v351, %v285
    %v357 = vsel %vm322, %v162, %v295
    %v358 = vsel %vm322, %v163, %v297
    %v359 = vsel %vm322, %v164, %v299
    %v360 = vsel %vm322, %v165, %v301
    %v361 = vsel %vm327, %v357, %v311
    %v362 = vsel %vm327, %v358, %v313
    %v363 = vsel %vm327, %v359, %v315
    %v364 = vsel %vm327, %v360, %v317
    %v366 = vsel %vm332, %v361, 0
    %v369 = vsel %vm332, %v362, 0
    %v372 = vsel %vm332, %v363, 0
    %v375 = vsel %vm332, %v364, 0
    %377 = vmatpush.msra.mxu0 %v49
    %378 = vmatpush.msra.mxu0 %v48
    %379 = vmatpush.msra.mxu0 %v47
    %380 = vmatpush.msra.mxu0 %v46
    %381 = vmatpush.msra.mxu0 %v45
    %382 = vmatpush.msra.mxu0 %v44
    %383 = vmatpush.msra.mxu0 %v43
    %384 = vmatpush.msra.mxu0 %v42
    %385 = vmatpush.msra.mxu0 %v41
    %386 = vmatpush.msra.mxu0 %v40
    %387 = vmatpush.msra.mxu0 %v39
    %388 = vmatpush.msra.mxu0 %v38
    %389 = vmatpush.msra.mxu0 %v37
    %390 = vmatpush.msra.mxu0 %v36
    %391 = vmatpush.msra.mxu0 %v35
    %392 = vmatpush.msra.mxu0 %v34
    %393 = vmatmul.f32.gmra.mxu0 %v353
    %v394 = vpop.f32.mrf.mxu0
    %v395 = vadd.f32 0.0, %v394
    %396 = vmatmul.f32.gmra.mxu0 %v354
    %v397 = vpop.f32.mrf.mxu0
    %v398 = vadd.f32 0.0, %v397
    %399 = vmatmul.f32.gmra.mxu0 %v355
    %v400 = vpop.f32.mrf.mxu0
    %v401 = vadd.f32 0.0, %v400
    %402 = vmatmul.f32.gmra.mxu0 %v356
    %v403 = vpop.f32.mrf.mxu0
    %v404 = vadd.f32 0.0, %v403
    %405 = vdwg.mxu0
    %406 = vmatpush.msra.mxu0 0.0
    %407 = vmatpush.msra.mxu0 0.0
    %408 = vmatpush.msra.mxu0 0.0
    %409 = vmatpush.msra.mxu0 0.0
    %410 = vmatpush.msra.mxu0 0.0
    %411 = vmatpush.msra.mxu0 0.0
    %412 = vmatpush.msra.mxu0 0.0
    %413 = vmatpush.msra.mxu0 0.0
    %414 = vmatpush.msra.mxu0 0.0
    %415 = vmatpush.msra.mxu0 0.0
    %416 = vmatpush.msra.mxu0 %v55
    %417 = vmatpush.msra.mxu0 %v54
    %418 = vmatpush.msra.mxu0 %v53
    %419 = vmatpush.msra.mxu0 %v52
    %420 = vmatpush.msra.mxu0 %v51
    %421 = vmatpush.msra.mxu0 %v50
    %422 = vmatmul.f32.gmra.mxu0 %v366
    %v423 = vpop.f32.mrf.mxu0
    %v424 = vadd.f32 %v395, %v423
    %425 = vmatmul.f32.gmra.mxu0 %v369
    %v426 = vpop.f32.mrf.mxu0
    %v427 = vadd.f32 %v398, %v426
    %428 = vmatmul.f32.gmra.mxu0 %v372
    %v429 = vpop.f32.mrf.mxu0
    %v430 = vadd.f32 %v401, %v429
    %431 = vmatmul.f32.gmra.mxu0 %v375
    %v432 = vpop.f32.mrf.mxu0
    %v433 = vadd.f32 %v404, %v432
    %434 = vdwg.mxu0
    %v435 = vld [vmem:[%s2] sm:$0x1]
    %v436 = vld [vmem:[%s3] sm:$0x1]
    %v437 = vsel %vm322, %v424, 0.0
    %v438 = vsel %vm322, %v427, 0.0
    %v439 = vadd.f32 %v437, %v438
    %v440 = vrot.slane %v439, 4
    %v441 = vadd.f32 %v439, %v440
    %v442 = vrot.slane %v441, 2
    %v443 = vadd.f32 %v441, %v442
    %v444 = vrot.slane %v443, 1
    %v445 = vadd.f32 %v443, %v444
    %v446 = vsel %vm322, %v430, 0.0
    %v447 = vsel %vm322, %v433, 0.0
    %v448 = vadd.f32 %v446, %v447
    %v449 = vrot.slane %v448, 4
    %v450 = vadd.f32 %v448, %v449
    %v451 = vrot.slane %v450, 2
    %v452 = vadd.f32 %v450, %v451
    %v453 = vrot.slane %v452, 1
    %v454 = vadd.f32 %v452, %v453
    %v455 = vmul.f32 %v424, %v424
    %v456 = vmul.f32 %v427, %v427
    %v457 = vmul.f32 %v430, %v430
    %v458 = vmul.f32 %v433, %v433
    %v459 = vsel %vm322, %v455, 0.0
    %v460 = vsel %vm322, %v456, 0.0
    %v461 = vadd.f32 %v459, %v460
    %v462 = vrot.slane %v461, 4
    %v463 = vadd.f32 %v461, %v462
    %v464 = vrot.slane %v463, 2
    %v465 = vadd.f32 %v463, %v464
    %v466 = vrot.slane %v465, 1
    %v467 = vadd.f32 %v465, %v466
    %v468 = vsel %vm322, %v457, 0.0
    %v469 = vsel %vm322, %v458, 0.0
    %v470 = vadd.f32 %v468, %v469
    %v471 = vrot.slane %v470, 4
    %v472 = vadd.f32 %v470, %v471
    %v473 = vrot.slane %v472, 2
    %v474 = vadd.f32 %v472, %v473
    %v475 = vrot.slane %v474, 1
    %v476 = vadd.f32 %v474, %v475
    %v477 = vmul.f32 %v445, 0.0625
    %v478 = vmul.f32 %v454, 0.0625
    %v479 = vmul.f32 %v467, 0.0625
    %v480 = vmul.f32 %v476, 0.0625
    %v481 = vmul.f32 %v477, %v477
    %v482 = vmul.f32 %v478, %v478
    %v483 = vsub.f32 %v479, %v481
    %v484 = vsub.f32 %v480, %v482
    %v485 = vmax.f32 %v483, 0.0
    %v486 = vmax.f32 %v484, 0.0
    %v487 = vadd.f32 %v485, 1e-05
    %v488 = vadd.f32 %v486, 1e-05
    %v489 = vrsqrt.pop %v487
    %v490 = vmul.f32 %v489, %v487
    %v491 = vmul.f32 %v490, %v489
    %v492 = vmul.f32 0.5, %v491
    %v493 = vsub.f32 1.5, %v492
    %v494 = vmul.f32 %v489, %v493
    %vm495 = vweird.f32 %v487
    %vm496 = vweird.f32 %v489
    %vm497 = vmor %vm495, %vm496
    %v498 = vsel %vm497, %v489, %v494
    %v499 = vrsqrt.pop %v488
    %v500 = vmul.f32 %v499, %v488
    %v501 = vmul.f32 %v500, %v499
    %v502 = vmul.f32 0.5, %v501
    %v503 = vsub.f32 1.5, %v502
    %v504 = vmul.f32 %v499, %v503
    %vm505 = vweird.f32 %v488
    %vm506 = vweird.f32 %v499
    %vm507 = vmor %vm505, %vm506
    %v508 = vsel %vm507, %v499, %v504
    %v509 = vsub.f32 %v424, %v477
    %v510 = vsub.f32 %v427, %v477
    %v511 = vsub.f32 %v430, %v478
    %v512 = vsub.f32 %v433, %v478
    %v513 = vmul.f32 %v509, %v498
    %v514 = vmul.f32 %v510, %v498
    %v515 = vmul.f32 %v511, %v508
    %v516 = vmul.f32 %v512, %v508
    %v518 = vperm.slane %v435, 0
    %v520 = vmul.f32 %v513, %v518
    %v521 = vmul.f32 %v514, %v518
    %v522 = vmul.f32 %v515, %v518
    %v523 = vmul.f32 %v516, %v518
    %v525 = vperm.slane %v436, 0
    %v527 = vadd.f32 %v520, %v525
    %v528 = vadd.f32 %v521, %v525
    %v529 = vadd.f32 %v522, %v525
    %v530 = vadd.f32 %v523, %v525
    %v531 = vmul.f32 %v527, 0.5
    %v532 = vmul.f32 %v528, 0.5
    %v533 = vmul.f32 %v529, 0.5
    %v534 = vmul.f32 %v530, 0.5
    %v535 = vmul.f32 %v527, 0.70710677
    %v536 = vmul.f32 %v528, 0.70710677
    %v537 = vmul.f32 %v529, 0.70710677
    %v538 = vmul.f32 %v530, 0.70710677
    %v539 = vmul.f32 %v535, %v535
    %v540 = vmin.f32 16.0, %v539
    %v541 = vmul.f32 %v540, 2.1237322e-06
    %v542 = vadd.f32 %v541, 0.00028619796
    %v543 = vmul.f32 %v540, %v542
    %v544 = vadd.f32 %v543, 0.0036580483
    %v545 = vmul.f32 %v540, %v544
    %v546 = vadd.f32 %v545, 0.05243302
    %v547 = vmul.f32 %v540, %v546
    %v548 = vadd.f32 %v547, 0.18741608
    %v549 = vmul.f32 %v540, %v548
    %v550 = vadd.f32 %v549, 1.1283791
    %v551 = vmul.f32 %v535, %v550
    %v552 = vmul.f32 %v540, 3.8918573e-05
    %v553 = vadd.f32 %v552, 0.001143296
    %v554 = vmul.f32 %v540, %v553
    %v555 = vadd.f32 %v554, 0.014752088
    %v556 = vmul.f32 %v540, %v555
    %v557 = vadd.f32 %v556, 0.112945676
    %v558 = vmul.f32 %v540, %v557
    %v559 = vadd.f32 %v558, 0.4994258
    %v560 = vmul.f32 %v540, %v559
    %v561 = vadd.f32 %v560, 1.0
    %v562 = vrcp.pop %v561
    %v563 = vmul.f32 %v561, %v562
    %v564 = vsub.f32 1.0, %v563
    %v565 = vmul.f32 %v562, %v564
    %v566 = vadd.f32 %v562, %v565
    %vm567 = vweird.f32 %v561
    %vm568 = vweird.f32 %v562
    %vm569 = vmor %vm567, %vm568
    %v570 = vsel %vm569, %v562, %v566
    %v571 = vand.u32 2147483647, %v561
    %vm572 = vcmp.eq.f32.partialorder %v571, 8.507059e+37
    %v573 = vand.u32 %v561, 2147483648
    %v574 = vor.u32 1.1754944e-38, %v573
    %v575 = vsel %vm572, %v574, %v570
    %v576 = vmul.f32 %v551, %v575
    %v577 = vmin.f32 %v576, 1.0
    %v578 = vmax.f32 %v577, -1.0
    %v579 = vmul.f32 %v536, %v536
    %v580 = vmin.f32 16.0, %v579
    %v581 = vmul.f32 %v580, 2.1237322e-06
    %v582 = vadd.f32 %v581, 0.00028619796
    %v583 = vmul.f32 %v580, %v582
    %v584 = vadd.f32 %v583, 0.0036580483
    %v585 = vmul.f32 %v580, %v584
    %v586 = vadd.f32 %v585, 0.05243302
    %v587 = vmul.f32 %v580, %v586
    %v588 = vadd.f32 %v587, 0.18741608
    %v589 = vmul.f32 %v580, %v588
    %v590 = vadd.f32 %v589, 1.1283791
    %v591 = vmul.f32 %v536, %v590
    %v592 = vmul.f32 %v580, 3.8918573e-05
    %v593 = vadd.f32 %v592, 0.001143296
    %v594 = vmul.f32 %v580, %v593
    %v595 = vadd.f32 %v594, 0.014752088
    %v596 = vmul.f32 %v580, %v595
    %v597 = vadd.f32 %v596, 0.112945676
    %v598 = vmul.f32 %v580, %v597
    %v599 = vadd.f32 %v598, 0.4994258
    %v600 = vmul.f32 %v580, %v599
    %v601 = vadd.f32 %v600, 1.0
    %v602 = vrcp.pop %v601
    %v603 = vmul.f32 %v601, %v602
    %v604 = vsub.f32 1.0, %v603
    %v605 = vmul.f32 %v602, %v604
    %v606 = vadd.f32 %v602, %v605
    %vm607 = vweird.f32 %v601
    %vm608 = vweird.f32 %v602
    %vm609 = vmor %vm607, %vm608
    %v610 = vsel %vm609, %v602, %v606
    %v611 = vand.u32 2147483647, %v601
    %vm612 = vcmp.eq.f32.partialorder %v611, 8.507059e+37
    %v613 = vand.u32 %v601, 2147483648
    %v614 = vor.u32 1.1754944e-38, %v613
    %v615 = vsel %vm612, %v614, %v610
    %v616 = vmul.f32 %v591, %v615
    %v617 = vmin.f32 %v616, 1.0
    %v618 = vmax.f32 %v617, -1.0
    %v619 = vmul.f32 %v537, %v537
    %v620 = vmin.f32 16.0, %v619
    %v621 = vmul.f32 %v620, 2.1237322e-06
    %v622 = vadd.f32 %v621, 0.00028619796
    %v623 = vmul.f32 %v620, %v622
    %v624 = vadd.f32 %v623, 0.0036580483
    %v625 = vmul.f32 %v620, %v624
    %v626 = vadd.f32 %v625, 0.05243302
    %v627 = vmul.f32 %v620, %v626
    %v628 = vadd.f32 %v627, 0.18741608
    %v629 = vmul.f32 %v620, %v628
    %v630 = vadd.f32 %v629, 1.1283791
    %v631 = vmul.f32 %v537, %v630
    %v632 = vmul.f32 %v620, 3.8918573e-05
    %v633 = vadd.f32 %v632, 0.001143296
    %v634 = vmul.f32 %v620, %v633
    %v635 = vadd.f32 %v634, 0.014752088
    %v636 = vmul.f32 %v620, %v635
    %v637 = vadd.f32 %v636, 0.112945676
    %v638 = vmul.f32 %v620, %v637
    %v639 = vadd.f32 %v638, 0.4994258
    %v640 = vmul.f32 %v620, %v639
    %v641 = vadd.f32 %v640, 1.0
    %v642 = vrcp.pop %v641
    %v643 = vmul.f32 %v641, %v642
    %v644 = vsub.f32 1.0, %v643
    %v645 = vmul.f32 %v642, %v644
    %v646 = vadd.f32 %v642, %v645
    %vm647 = vweird.f32 %v641
    %vm648 = vweird.f32 %v642
    %vm649 = vmor %vm647, %vm648
    %v650 = vsel %vm649, %v642, %v646
    %v651 = vand.u32 2147483647, %v641
    %vm652 = vcmp.eq.f32.partialorder %v651, 8.507059e+37
    %v653 = vand.u32 %v641, 2147483648
    %v654 = vor.u32 1.1754944e-38, %v653
    %v655 = vsel %vm652, %v654, %v650
    %v656 = vmul.f32 %v631, %v655
    %v657 = vmin.f32 %v656, 1.0
    %v658 = vmax.f32 %v657, -1.0
    %v659 = vmul.f32 %v538, %v538
    %v660 = vmin.f32 16.0, %v659
    %v661 = vmul.f32 %v660, 2.1237322e-06
    %v662 = vadd.f32 %v661, 0.00028619796
    %v663 = vmul.f32 %v660, %v662
    %v664 = vadd.f32 %v663, 0.0036580483
    %v665 = vmul.f32 %v660, %v664
    %v666 = vadd.f32 %v665, 0.05243302
    %v667 = vmul.f32 %v660, %v666
    %v668 = vadd.f32 %v667, 0.18741608
    %v669 = vmul.f32 %v660, %v668
    %v670 = vadd.f32 %v669, 1.1283791
    %v671 = vmul.f32 %v538, %v670
    %v672 = vmul.f32 %v660, 3.8918573e-05
    %v673 = vadd.f32 %v672, 0.001143296
    %v674 = vmul.f32 %v660, %v673
    %v675 = vadd.f32 %v674, 0.014752088
    %v676 = vmul.f32 %v660, %v675
    %v677 = vadd.f32 %v676, 0.112945676
    %v678 = vmul.f32 %v660, %v677
    %v679 = vadd.f32 %v678, 0.4994258
    %v680 = vmul.f32 %v660, %v679
    %v681 = vadd.f32 %v680, 1.0
    %v682 = vrcp.pop %v681
    %v683 = vmul.f32 %v681, %v682
    %v684 = vsub.f32 1.0, %v683
    %v685 = vmul.f32 %v682, %v684
    %v686 = vadd.f32 %v682, %v685
    %vm687 = vweird.f32 %v681
    %vm688 = vweird.f32 %v682
    %vm689 = vmor %vm687, %vm688
    %v690 = vsel %vm689, %v682, %v686
    %v691 = vand.u32 2147483647, %v681
    %vm692 = vcmp.eq.f32.partialorder %v691, 8.507059e+37
    %v693 = vand.u32 %v681, 2147483648
    %v694 = vor.u32 1.1754944e-38, %v693
    %v695 = vsel %vm692, %v694, %v690
    %v696 = vmul.f32 %v671, %v695
    %v697 = vmin.f32 %v696, 1.0
    %v698 = vmax.f32 %v697, -1.0
    %v699 = vadd.f32 %v578, 1.0
    %v700 = vadd.f32 %v618, 1.0
    %v701 = vadd.f32 %v658, 1.0
    %v702 = vadd.f32 %v698, 1.0
    %v703 = vmul.f32 %v531, %v699
    %v704 = vmul.f32 %v532, %v700
    %v705 = vmul.f32 %v533, %v701
    %v706 = vmul.f32 %v534, %v702
    %v707 = vld [vmem:[%s4] sm:$0xff]
    %v708 = vld [vmem:[%s4 + $0x8] sm:$0xff]
    %v709 = vld [vmem:[%s4 + $0x10] sm:$0xff]
    %v710 = vld [vmem:[%s4 + $0x18] sm:$0xff]
    %v711 = vld [vmem:[%s4 + $0x20] sm:$0xff]
    %v712 = vld [vmem:[%s4 + $0x28] sm:$0xff]
    %v713 = vld [vmem:[%s4 + $0x30] sm:$0xff]
    %v714 = vld [vmem:[%s4 + $0x38] sm:$0xff]
    %v715 = vld [vmem:[%s4 + $0x40] sm:$0xff]
    %v716 = vld [vmem:[%s4 + $0x48] sm:$0xff]
    %v717 = vld [vmem:[%s4 + $0x50] sm:$0xff]
    %v718 = vld [vmem:[%s4 + $0x58] sm:$0xff]
    %v719 = vld [vmem:[%s4 + $0x60] sm:$0xff]
    %v720 = vld [vmem:[%s4 + $0x68] sm:$0xff]
    %v721 = vld [vmem:[%s4 + $0x70] sm:$0xff]
    %v722 = vld [vmem:[%s4 + $0x78] sm:$0xff]
    %v723 = vld [vmem:[%s4 + $0x80] sm:$0xff]
    %v724 = vld [vmem:[%s4 + $0x88] sm:$0xff]
    %v725 = vld [vmem:[%s4 + $0x90] sm:$0xff]
    %v726 = vld [vmem:[%s4 + $0x98] sm:$0xff]
    %v727 = vld [vmem:[%s4 + $0xa0] sm:$0xff]
    %v728 = vld [vmem:[%s4 + $0xa8] sm:$0xff]
    %v729 = vperm.slane %v703, 0
    %v730 = vperm.slane %v705, 0
    %v731 = vperm.slane %v704, 7
    %v732 = vperm.slane %v706, 7
    %v733 = vrot.slane %v703, 3
    %v734 = vrot.slane %v704, 3
    %v735 = vrot.slane %v705, 3
    %v736 = vrot.slane %v706, 3
    %v737 = vsel %vm64, %v735, %v736
    %v738 = vsel %vm64, %v734, %v735
    %v739 = vsel %vm64, %v733, %v734
    %v740 = vsel %vm64, %v736, %v733
    %v741 = vsel %vm64, %v729, %v740
    %v742 = vsel %vm69, %v729, %v739
    %v743 = vsel %vm64, %v730, %v738
    %v744 = vsel %vm69, %v730, %v737
    %v745 = vrot.slane %v703, 4
    %v746 = vrot.slane %v704, 4
    %v747 = vrot.slane %v705, 4
    %v748 = vrot.slane %v706, 4
    %v749 = vsel %vm78, %v747, %v748
    %v750 = vsel %vm78, %v746, %v747
    %v751 = vsel %vm78, %v745, %v746
    %v752 = vsel %vm78, %v748, %v745
    %v753 = vsel %vm78, %v729, %v752
    %v754 = vsel %vm83, %v729, %v751
    %v755 = vsel %vm78, %v730, %v750
    %v756 = vsel %vm83, %v730, %v749
    %v757 = vrot.slane %v703, 5
    %v758 = vrot.slane %v704, 5
    %v759 = vrot.slane %v705, 5
    %v760 = vrot.slane %v706, 5
    %v761 = vsel %vm92, %v759, %v760
    %v762 = vsel %vm92, %v758, %v759
    %v763 = vsel %vm92, %v757, %v758
    %v764 = vsel %vm92, %v760, %v757
    %v765 = vsel %vm92, %v729, %v764
    %v766 = vsel %vm97, %v729, %v763
    %v767 = vsel %vm92, %v730, %v762
    %v768 = vsel %vm97, %v730, %v761
    %v769 = vrot.slane %v703, 6
    %v770 = vrot.slane %v704, 6
    %v771 = vrot.slane %v705, 6
    %v772 = vrot.slane %v706, 6
    %v773 = vsel %vm106, %v771, %v772
    %v774 = vsel %vm106, %v770, %v771
    %v775 = vsel %vm106, %v769, %v770
    %v776 = vsel %vm106, %v772, %v769
    %v777 = vsel %vm106, %v729, %v776
    %v778 = vsel %vm111, %v729, %v775
    %v779 = vsel %vm106, %v730, %v774
    %v780 = vsel %vm111, %v730, %v773
    %v781 = vrot.slane %v703, 7
    %v782 = vrot.slane %v704, 7
    %v783 = vrot.slane %v705, 7
    %v784 = vrot.slane %v706, 7
    %v785 = vsel %vm120, %v783, %v784
    %v786 = vsel %vm120, %v782, %v783
    %v787 = vsel %vm120, %v781, %v782
    %v788 = vsel %vm120, %v784, %v781
    %v789 = vsel %vm120, %v729, %v788
    %v790 = vsel %vm125, %v729, %v787
    %v791 = vsel %vm120, %v730, %v786
    %v792 = vsel %vm125, %v730, %v785
    %v793 = vrot.slane %v703, 1
    %v794 = vrot.slane %v704, 1
    %v795 = vrot.slane %v705, 1
    %v796 = vrot.slane %v706, 1
    %v797 = vsel %vm134, %v795, %v796
    %v798 = vsel %vm134, %v794, %v795
    %v799 = vsel %vm134, %v793, %v794
    %v800 = vsel %vm134, %v796, %v793
    %v801 = vsel %vm139, %v731, %v799
    %v802 = vsel %vm140, %v731, %v798
    %v803 = vsel %vm139, %v732, %v797
    %v804 = vsel %vm140, %v732, %v800
    %v805 = vrot.slane %v703, 2
    %v806 = vrot.slane %v704, 2
    %v807 = vrot.slane %v705, 2
    %v808 = vrot.slane %v706, 2
    %v809 = vsel %vm149, %v807, %v808
    %v810 = vsel %vm149, %v806, %v807
    %v811 = vsel %vm149, %v805, %v806
    %v812 = vsel %vm149, %v808, %v805
    %v813 = vsel %vm154, %v731, %v811
    %v814 = vsel %vm155, %v731, %v810
    %v815 = vsel %vm154, %v732, %v809
    %v816 = vsel %vm155, %v732, %v812
    %v817 = vsel %vm160, %v731, %v739
    %v818 = vsel %vm161, %v731, %v738
    %v819 = vsel %vm160, %v732, %v737
    %v820 = vsel %vm161, %v732, %v740
    %v821 = vsel %vm166, %v731, %v751
    %v822 = vsel %vm167, %v731, %v750
    %v823 = vsel %vm166, %v732, %v749
    %v824 = vsel %vm167, %v732, %v752
    %v825 = vsel %vm172, %v731, %v763
    %v826 = vsel %vm173, %v731, %v762
    %v827 = vsel %vm172, %v732, %v761
    %v828 = vsel %vm173, %v732, %v764
    %833 = vrot.lane.b32.xlu0 %v753, 16
    %v834 = vpop.permute.xlu0 %833
    %835 = vrot.lane.b32.xlu0 %v754, 16
    %v836 = vpop.permute.xlu0 %835
    %837 = vrot.lane.b32.xlu0 %v755, 16
    %v838 = vpop.permute.xlu0 %837
    %839 = vrot.lane.b32.xlu0 %v756, 16
    %v840 = vpop.permute.xlu0 %839
    %849 = vrot.lane.b32.xlu0 %v765, 32
    %v850 = vpop.permute.xlu0 %849
    %851 = vrot.lane.b32.xlu0 %v766, 32
    %v852 = vpop.permute.xlu0 %851
    %853 = vrot.lane.b32.xlu0 %v767, 32
    %v854 = vpop.permute.xlu0 %853
    %855 = vrot.lane.b32.xlu0 %v768, 32
    %v856 = vpop.permute.xlu0 %855
    %865 = vrot.lane.b32.xlu0 %v777, 48
    %v866 = vpop.permute.xlu0 %865
    %867 = vrot.lane.b32.xlu0 %v778, 48
    %v868 = vpop.permute.xlu0 %867
    %869 = vrot.lane.b32.xlu0 %v779, 48
    %v870 = vpop.permute.xlu0 %869
    %871 = vrot.lane.b32.xlu0 %v780, 48
    %v872 = vpop.permute.xlu0 %871
    %881 = vrot.lane.b32.xlu0 %v789, 64
    %v882 = vpop.permute.xlu0 %881
    %883 = vrot.lane.b32.xlu0 %v790, 64
    %v884 = vpop.permute.xlu0 %883
    %885 = vrot.lane.b32.xlu0 %v791, 64
    %v886 = vpop.permute.xlu0 %885
    %887 = vrot.lane.b32.xlu0 %v792, 64
    %v888 = vpop.permute.xlu0 %887
    %897 = vrot.lane.b32.xlu0 %v703, 80
    %v898 = vpop.permute.xlu0 %897
    %899 = vrot.lane.b32.xlu0 %v704, 80
    %v900 = vpop.permute.xlu0 %899
    %901 = vrot.lane.b32.xlu0 %v705, 80
    %v902 = vpop.permute.xlu0 %901
    %903 = vrot.lane.b32.xlu0 %v706, 80
    %v904 = vpop.permute.xlu0 %903
    %913 = vrot.lane.b32.xlu0 %v801, 96
    %v914 = vpop.permute.xlu0 %913
    %915 = vrot.lane.b32.xlu0 %v802, 96
    %v916 = vpop.permute.xlu0 %915
    %917 = vrot.lane.b32.xlu0 %v803, 96
    %v918 = vpop.permute.xlu0 %917
    %919 = vrot.lane.b32.xlu0 %v804, 96
    %v920 = vpop.permute.xlu0 %919
    %929 = vrot.lane.b32.xlu0 %v813, 112
    %v930 = vpop.permute.xlu0 %929
    %931 = vrot.lane.b32.xlu0 %v814, 112
    %v932 = vpop.permute.xlu0 %931
    %933 = vrot.lane.b32.xlu0 %v815, 112
    %v934 = vpop.permute.xlu0 %933
    %935 = vrot.lane.b32.xlu0 %v816, 112
    %v936 = vpop.permute.xlu0 %935
    %945 = vrot.lane.b32.xlu0 %v821, 16
    %v946 = vpop.permute.xlu0 %945
    %947 = vrot.lane.b32.xlu0 %v822, 16
    %v948 = vpop.permute.xlu0 %947
    %949 = vrot.lane.b32.xlu0 %v823, 16
    %v950 = vpop.permute.xlu0 %949
    %951 = vrot.lane.b32.xlu0 %v824, 16
    %v952 = vpop.permute.xlu0 %951
    %961 = vrot.lane.b32.xlu0 %v825, 32
    %v962 = vpop.permute.xlu0 %961
    %963 = vrot.lane.b32.xlu0 %v826, 32
    %v964 = vpop.permute.xlu0 %963
    %965 = vrot.lane.b32.xlu0 %v827, 32
    %v966 = vpop.permute.xlu0 %965
    %967 = vrot.lane.b32.xlu0 %v828, 32
    %v968 = vpop.permute.xlu0 %967
    %v973 = vsel %vm322, %v741, %v834
    %v974 = vsel %vm322, %v742, %v836
    %v975 = vsel %vm322, %v743, %v838
    %v976 = vsel %vm322, %v744, %v840
    %v977 = vsel %vm327, %v973, %v850
    %v978 = vsel %vm327, %v974, %v852
    %v979 = vsel %vm327, %v975, %v854
    %v980 = vsel %vm327, %v976, %v856
    %v981 = vsel %vm332, %v977, %v866
    %v982 = vsel %vm332, %v978, %v868
    %v983 = vsel %vm332, %v979, %v870
    %v984 = vsel %vm332, %v980, %v872
    %v985 = vsel %vm337, %v981, %v882
    %v986 = vsel %vm337, %v982, %v884
    %v987 = vsel %vm337, %v983, %v886
    %v988 = vsel %vm337, %v984, %v888
    %v989 = vsel %vm342, %v985, %v898
    %v990 = vsel %vm342, %v986, %v900
    %v991 = vsel %vm342, %v987, %v902
    %v992 = vsel %vm342, %v988, %v904
    %v993 = vsel %vm347, %v989, %v914
    %v994 = vsel %vm347, %v990, %v916
    %v995 = vsel %vm347, %v991, %v918
    %v996 = vsel %vm347, %v992, %v920
    %v997 = vsel %vm352, %v993, %v930
    %v998 = vsel %vm352, %v994, %v932
    %v999 = vsel %vm352, %v995, %v934
    %v1000 = vsel %vm352, %v996, %v936
    %v1001 = vsel %vm322, %v817, %v946
    %v1002 = vsel %vm322, %v818, %v948
    %v1003 = vsel %vm322, %v819, %v950
    %v1004 = vsel %vm322, %v820, %v952
    %v1005 = vsel %vm327, %v1001, %v962
    %v1006 = vsel %vm327, %v1002, %v964
    %v1007 = vsel %vm327, %v1003, %v966
    %v1008 = vsel %vm327, %v1004, %v968
    %v1010 = vsel %vm332, %v1005, 0
    %v1013 = vsel %vm332, %v1006, 0
    %v1016 = vsel %vm332, %v1007, 0
    %v1019 = vsel %vm332, %v1008, 0
    %1021 = vmatpush.msra.mxu0 %v722
    %1022 = vmatpush.msra.mxu0 %v721
    %1023 = vmatpush.msra.mxu0 %v720
    %1024 = vmatpush.msra.mxu0 %v719
    %1025 = vmatpush.msra.mxu0 %v718
    %1026 = vmatpush.msra.mxu0 %v717
    %1027 = vmatpush.msra.mxu0 %v716
    %1028 = vmatpush.msra.mxu0 %v715
    %1029 = vmatpush.msra.mxu0 %v714
    %1030 = vmatpush.msra.mxu0 %v713
    %1031 = vmatpush.msra.mxu0 %v712
    %1032 = vmatpush.msra.mxu0 %v711
    %1033 = vmatpush.msra.mxu0 %v710
    %1034 = vmatpush.msra.mxu0 %v709
    %1035 = vmatpush.msra.mxu0 %v708
    %1036 = vmatpush.msra.mxu0 %v707
    %1037 = vmatmul.f32.gmra.mxu0 %v997
    %v1038 = vpop.f32.mrf.mxu0
    %v1039 = vadd.f32 0.0, %v1038
    %1040 = vmatmul.f32.gmra.mxu0 %v998
    %v1041 = vpop.f32.mrf.mxu0
    %v1042 = vadd.f32 0.0, %v1041
    %1043 = vmatmul.f32.gmra.mxu0 %v999
    %v1044 = vpop.f32.mrf.mxu0
    %v1045 = vadd.f32 0.0, %v1044
    %1046 = vmatmul.f32.gmra.mxu0 %v1000
    %v1047 = vpop.f32.mrf.mxu0
    %v1048 = vadd.f32 0.0, %v1047
    %1049 = vdwg.mxu0
    %1050 = vmatpush.msra.mxu0 0.0
    %1051 = vmatpush.msra.mxu0 0.0
    %1052 = vmatpush.msra.mxu0 0.0
    %1053 = vmatpush.msra.mxu0 0.0
    %1054 = vmatpush.msra.mxu0 0.0
    %1055 = vmatpush.msra.mxu0 0.0
    %1056 = vmatpush.msra.mxu0 0.0
    %1057 = vmatpush.msra.mxu0 0.0
    %1058 = vmatpush.msra.mxu0 0.0
    %1059 = vmatpush.msra.mxu0 0.0
    %1060 = vmatpush.msra.mxu0 %v728
    %1061 = vmatpush.msra.mxu0 %v727
    %1062 = vmatpush.msra.mxu0 %v726
    %1063 = vmatpush.msra.mxu0 %v725
    %1064 = vmatpush.msra.mxu0 %v724
    %1065 = vmatpush.msra.mxu0 %v723
    %1066 = vmatmul.f32.gmra.mxu0 %v1010
    %v1067 = vpop.f32.mrf.mxu0
    %v1068 = vadd.f32 %v1039, %v1067
    %1069 = vmatmul.f32.gmra.mxu0 %v1013
    %v1070 = vpop.f32.mrf.mxu0
    %v1071 = vadd.f32 %v1042, %v1070
    %1072 = vmatmul.f32.gmra.mxu0 %v1016
    %v1073 = vpop.f32.mrf.mxu0
    %v1074 = vadd.f32 %v1045, %v1073
    %1075 = vmatmul.f32.gmra.mxu0 %v1019
    %v1076 = vpop.f32.mrf.mxu0
    %v1077 = vadd.f32 %v1048, %v1076
    %1078 = vdwg.mxu0
    %v1079 = vld [vmem:[%s5] sm:$0x1]
    %v1080 = vld [vmem:[%s6] sm:$0x1]
    %v1081 = vsel %vm322, %v1068, 0.0
    %v1082 = vsel %vm322, %v1071, 0.0
    %v1083 = vadd.f32 %v1081, %v1082
    %v1084 = vrot.slane %v1083, 4
    %v1085 = vadd.f32 %v1083, %v1084
    %v1086 = vrot.slane %v1085, 2
    %v1087 = vadd.f32 %v1085, %v1086
    %v1088 = vrot.slane %v1087, 1
    %v1089 = vadd.f32 %v1087, %v1088
    %v1090 = vsel %vm322, %v1074, 0.0
    %v1091 = vsel %vm322, %v1077, 0.0
    %v1092 = vadd.f32 %v1090, %v1091
    %v1093 = vrot.slane %v1092, 4
    %v1094 = vadd.f32 %v1092, %v1093
    %v1095 = vrot.slane %v1094, 2
    %v1096 = vadd.f32 %v1094, %v1095
    %v1097 = vrot.slane %v1096, 1
    %v1098 = vadd.f32 %v1096, %v1097
    %v1099 = vmul.f32 %v1068, %v1068
    %v1100 = vmul.f32 %v1071, %v1071
    %v1101 = vmul.f32 %v1074, %v1074
    %v1102 = vmul.f32 %v1077, %v1077
    %v1103 = vsel %vm322, %v1099, 0.0
    %v1104 = vsel %vm322, %v1100, 0.0
    %v1105 = vadd.f32 %v1103, %v1104
    %v1106 = vrot.slane %v1105, 4
    %v1107 = vadd.f32 %v1105, %v1106
    %v1108 = vrot.slane %v1107, 2
    %v1109 = vadd.f32 %v1107, %v1108
    %v1110 = vrot.slane %v1109, 1
    %v1111 = vadd.f32 %v1109, %v1110
    %v1112 = vsel %vm322, %v1101, 0.0
    %v1113 = vsel %vm322, %v1102, 0.0
    %v1114 = vadd.f32 %v1112, %v1113
    %v1115 = vrot.slane %v1114, 4
    %v1116 = vadd.f32 %v1114, %v1115
    %v1117 = vrot.slane %v1116, 2
    %v1118 = vadd.f32 %v1116, %v1117
    %v1119 = vrot.slane %v1118, 1
    %v1120 = vadd.f32 %v1118, %v1119
    %v1121 = vmul.f32 %v1089, 0.0625
    %v1122 = vmul.f32 %v1098, 0.0625
    %v1123 = vmul.f32 %v1111, 0.0625
    %v1124 = vmul.f32 %v1120, 0.0625
    %v1125 = vmul.f32 %v1121, %v1121
    %v1126 = vmul.f32 %v1122, %v1122
    %v1127 = vsub.f32 %v1123, %v1125
    %v1128 = vsub.f32 %v1124, %v1126
    %v1129 = vmax.f32 %v1127, 0.0
    %v1130 = vmax.f32 %v1128, 0.0
    %v1131 = vadd.f32 %v1129, 1e-05
    %v1132 = vadd.f32 %v1130, 1e-05
    %v1133 = vrsqrt.pop %v1131
    %v1134 = vmul.f32 %v1133, %v1131
    %v1135 = vmul.f32 %v1134, %v1133
    %v1136 = vmul.f32 0.5, %v1135
    %v1137 = vsub.f32 1.5, %v1136
    %v1138 = vmul.f32 %v1133, %v1137
    %vm1139 = vweird.f32 %v1131
    %vm1140 = vweird.f32 %v1133
    %vm1141 = vmor %vm1139, %vm1140
    %v1142 = vsel %vm1141, %v1133, %v1138
    %v1143 = vrsqrt.pop %v1132
    %v1144 = vmul.f32 %v1143, %v1132
    %v1145 = vmul.f32 %v1144, %v1143
    %v1146 = vmul.f32 0.5, %v1145
    %v1147 = vsub.f32 1.5, %v1146
    %v1148 = vmul.f32 %v1143, %v1147
    %vm1149 = vweird.f32 %v1132
    %vm1150 = vweird.f32 %v1143
    %vm1151 = vmor %vm1149, %vm1150
    %v1152 = vsel %vm1151, %v1143, %v1148
    %v1153 = vsub.f32 %v1068, %v1121
    %v1154 = vsub.f32 %v1071, %v1121
    %v1155 = vsub.f32 %v1074, %v1122
    %v1156 = vsub.f32 %v1077, %v1122
    %v1157 = vmul.f32 %v1153, %v1142
    %v1158 = vmul.f32 %v1154, %v1142
    %v1159 = vmul.f32 %v1155, %v1152
    %v1160 = vmul.f32 %v1156, %v1152
    %v1162 = vperm.slane %v1079, 0
    %v1164 = vmul.f32 %v1157, %v1162
    %v1165 = vmul.f32 %v1158, %v1162
    %v1166 = vmul.f32 %v1159, %v1162
    %v1167 = vmul.f32 %v1160, %v1162
    %v1169 = vperm.slane %v1080, 0
    %v1171 = vadd.f32 %v1164, %v1169
    %v1172 = vadd.f32 %v1165, %v1169
    %v1173 = vadd.f32 %v1166, %v1169
    %v1174 = vadd.f32 %v1167, %v1169
    %v1175 = vadd.f32 %v30, %v1171
    %v1176 = vadd.f32 %v31, %v1172
    %v1177 = vadd.f32 %v32, %v1173
    %v1178 = vadd.f32 %v33, %v1174
    %v1179 = vmul.f32 %v1175, 0.5
    %v1180 = vmul.f32 %v1176, 0.5
    %v1181 = vmul.f32 %v1177, 0.5
    %v1182 = vmul.f32 %v1178, 0.5
    %v1183 = vmul.f32 %v1175, 0.70710677
    %v1184 = vmul.f32 %v1176, 0.70710677
    %v1185 = vmul.f32 %v1177, 0.70710677
    %v1186 = vmul.f32 %v1178, 0.70710677
    %v1187 = vmul.f32 %v1183, %v1183
    %v1188 = vmin.f32 16.0, %v1187
    %v1189 = vmul.f32 %v1188, 2.1237322e-06
    %v1190 = vadd.f32 %v1189, 0.00028619796
    %v1191 = vmul.f32 %v1188, %v1190
    %v1192 = vadd.f32 %v1191, 0.0036580483
    %v1193 = vmul.f32 %v1188, %v1192
    %v1194 = vadd.f32 %v1193, 0.05243302
    %v1195 = vmul.f32 %v1188, %v1194
    %v1196 = vadd.f32 %v1195, 0.18741608
    %v1197 = vmul.f32 %v1188, %v1196
    %v1198 = vadd.f32 %v1197, 1.1283791
    %v1199 = vmul.f32 %v1183, %v1198
    %v1200 = vmul.f32 %v1188, 3.8918573e-05
    %v1201 = vadd.f32 %v1200, 0.001143296
    %v1202 = vmul.f32 %v1188, %v1201
    %v1203 = vadd.f32 %v1202, 0.014752088
    %v1204 = vmul.f32 %v1188, %v1203
    %v1205 = vadd.f32 %v1204, 0.112945676
    %v1206 = vmul.f32 %v1188, %v1205
    %v1207 = vadd.f32 %v1206, 0.4994258
    %v1208 = vmul.f32 %v1188, %v1207
    %v1209 = vadd.f32 %v1208, 1.0
    %v1210 = vrcp.pop %v1209
    %v1211 = vmul.f32 %v1209, %v1210
    %v1212 = vsub.f32 1.0, %v1211
    %v1213 = vmul.f32 %v1210, %v1212
    %v1214 = vadd.f32 %v1210, %v1213
    %vm1215 = vweird.f32 %v1209
    %vm1216 = vweird.f32 %v1210
    %vm1217 = vmor %vm1215, %vm1216
    %v1218 = vsel %vm1217, %v1210, %v1214
    %v1219 = vand.u32 2147483647, %v1209
    %vm1220 = vcmp.eq.f32.partialorder %v1219, 8.507059e+37
    %v1221 = vand.u32 %v1209, 2147483648
    %v1222 = vor.u32 1.1754944e-38, %v1221
    %v1223 = vsel %vm1220, %v1222, %v1218
    %v1224 = vmul.f32 %v1199, %v1223
    %v1225 = vmin.f32 %v1224, 1.0
    %v1226 = vmax.f32 %v1225, -1.0
    %v1227 = vmul.f32 %v1184, %v1184
    %v1228 = vmin.f32 16.0, %v1227
    %v1229 = vmul.f32 %v1228, 2.1237322e-06
    %v1230 = vadd.f32 %v1229, 0.00028619796
    %v1231 = vmul.f32 %v1228, %v1230
    %v1232 = vadd.f32 %v1231, 0.0036580483
    %v1233 = vmul.f32 %v1228, %v1232
    %v1234 = vadd.f32 %v1233, 0.05243302
    %v1235 = vmul.f32 %v1228, %v1234
    %v1236 = vadd.f32 %v1235, 0.18741608
    %v1237 = vmul.f32 %v1228, %v1236
    %v1238 = vadd.f32 %v1237, 1.1283791
    %v1239 = vmul.f32 %v1184, %v1238
    %v1240 = vmul.f32 %v1228, 3.8918573e-05
    %v1241 = vadd.f32 %v1240, 0.001143296
    %v1242 = vmul.f32 %v1228, %v1241
    %v1243 = vadd.f32 %v1242, 0.014752088
    %v1244 = vmul.f32 %v1228, %v1243
    %v1245 = vadd.f32 %v1244, 0.112945676
    %v1246 = vmul.f32 %v1228, %v1245
    %v1247 = vadd.f32 %v1246, 0.4994258
    %v1248 = vmul.f32 %v1228, %v1247
    %v1249 = vadd.f32 %v1248, 1.0
    %v1250 = vrcp.pop %v1249
    %v1251 = vmul.f32 %v1249, %v1250
    %v1252 = vsub.f32 1.0, %v1251
    %v1253 = vmul.f32 %v1250, %v1252
    %v1254 = vadd.f32 %v1250, %v1253
    %vm1255 = vweird.f32 %v1249
    %vm1256 = vweird.f32 %v1250
    %vm1257 = vmor %vm1255, %vm1256
    %v1258 = vsel %vm1257, %v1250, %v1254
    %v1259 = vand.u32 2147483647, %v1249
    %vm1260 = vcmp.eq.f32.partialorder %v1259, 8.507059e+37
    %v1261 = vand.u32 %v1249, 2147483648
    %v1262 = vor.u32 1.1754944e-38, %v1261
    %v1263 = vsel %vm1260, %v1262, %v1258
    %v1264 = vmul.f32 %v1239, %v1263
    %v1265 = vmin.f32 %v1264, 1.0
    %v1266 = vmax.f32 %v1265, -1.0
    %v1267 = vmul.f32 %v1185, %v1185
    %v1268 = vmin.f32 16.0, %v1267
    %v1269 = vmul.f32 %v1268, 2.1237322e-06
    %v1270 = vadd.f32 %v1269, 0.00028619796
    %v1271 = vmul.f32 %v1268, %v1270
    %v1272 = vadd.f32 %v1271, 0.0036580483
    %v1273 = vmul.f32 %v1268, %v1272
    %v1274 = vadd.f32 %v1273, 0.05243302
    %v1275 = vmul.f32 %v1268, %v1274
    %v1276 = vadd.f32 %v1275, 0.18741608
    %v1277 = vmul.f32 %v1268, %v1276
    %v1278 = vadd.f32 %v1277, 1.1283791
    %v1279 = vmul.f32 %v1185, %v1278
    %v1280 = vmul.f32 %v1268, 3.8918573e-05
    %v1281 = vadd.f32 %v1280, 0.001143296
    %v1282 = vmul.f32 %v1268, %v1281
    %v1283 = vadd.f32 %v1282, 0.014752088
    %v1284 = vmul.f32 %v1268, %v1283
    %v1285 = vadd.f32 %v1284, 0.112945676
    %v1286 = vmul.f32 %v1268, %v1285
    %v1287 = vadd.f32 %v1286, 0.4994258
    %v1288 = vmul.f32 %v1268, %v1287
    %v1289 = vadd.f32 %v1288, 1.0
    %v1290 = vrcp.pop %v1289
    %v1291 = vmul.f32 %v1289, %v1290
    %v1292 = vsub.f32 1.0, %v1291
    %v1293 = vmul.f32 %v1290, %v1292
    %v1294 = vadd.f32 %v1290, %v1293
    %vm1295 = vweird.f32 %v1289
    %vm1296 = vweird.f32 %v1290
    %vm1297 = vmor %vm1295, %vm1296
    %v1298 = vsel %vm1297, %v1290, %v1294
    %v1299 = vand.u32 2147483647, %v1289
    %vm1300 = vcmp.eq.f32.partialorder %v1299, 8.507059e+37
    %v1301 = vand.u32 %v1289, 2147483648
    %v1302 = vor.u32 1.1754944e-38, %v1301
    %v1303 = vsel %vm1300, %v1302, %v1298
    %v1304 = vmul.f32 %v1279, %v1303
    %v1305 = vmin.f32 %v1304, 1.0
    %v1306 = vmax.f32 %v1305, -1.0
    %v1307 = vmul.f32 %v1186, %v1186
    %v1308 = vmin.f32 16.0, %v1307
    %v1309 = vmul.f32 %v1308, 2.1237322e-06
    %v1310 = vadd.f32 %v1309, 0.00028619796
    %v1311 = vmul.f32 %v1308, %v1310
    %v1312 = vadd.f32 %v1311, 0.0036580483
    %v1313 = vmul.f32 %v1308, %v1312
    %v1314 = vadd.f32 %v1313, 0.05243302
    %v1315 = vmul.f32 %v1308, %v1314
    %v1316 = vadd.f32 %v1315, 0.18741608
    %v1317 = vmul.f32 %v1308, %v1316
    %v1318 = vadd.f32 %v1317, 1.1283791
    %v1319 = vmul.f32 %v1186, %v1318
    %v1320 = vmul.f32 %v1308, 3.8918573e-05
    %v1321 = vadd.f32 %v1320, 0.001143296
    %v1322 = vmul.f32 %v1308, %v1321
    %v1323 = vadd.f32 %v1322, 0.014752088
    %v1324 = vmul.f32 %v1308, %v1323
    %v1325 = vadd.f32 %v1324, 0.112945676
    %v1326 = vmul.f32 %v1308, %v1325
    %v1327 = vadd.f32 %v1326, 0.4994258
    %v1328 = vmul.f32 %v1308, %v1327
    %v1329 = vadd.f32 %v1328, 1.0
    %v1330 = vrcp.pop %v1329
    %v1331 = vmul.f32 %v1329, %v1330
    %v1332 = vsub.f32 1.0, %v1331
    %v1333 = vmul.f32 %v1330, %v1332
    %v1334 = vadd.f32 %v1330, %v1333
    %vm1335 = vweird.f32 %v1329
    %vm1336 = vweird.f32 %v1330
    %vm1337 = vmor %vm1335, %vm1336
    %v1338 = vsel %vm1337, %v1330, %v1334
    %v1339 = vand.u32 2147483647, %v1329
    %vm1340 = vcmp.eq.f32.partialorder %v1339, 8.507059e+37
    %v1341 = vand.u32 %v1329, 2147483648
    %v1342 = vor.u32 1.1754944e-38, %v1341
    %v1343 = vsel %vm1340, %v1342, %v1338
    %v1344 = vmul.f32 %v1319, %v1343
    %v1345 = vmin.f32 %v1344, 1.0
    %v1346 = vmax.f32 %v1345, -1.0
    %v1347 = vadd.f32 %v1226, 1.0
    %v1348 = vadd.f32 %v1266, 1.0
    %v1349 = vadd.f32 %v1306, 1.0
    %v1350 = vadd.f32 %v1346, 1.0
    %v1351 = vmul.f32 %v1179, %v1347
    %v1352 = vmul.f32 %v1180, %v1348
    %v1353 = vmul.f32 %v1181, %v1349
    %v1354 = vmul.f32 %v1182, %v1350
    %s1355 = scalar_lea.vmem %s1, 176
    %v1356 = vld [vmem:[%s1355] sm:$0xff]
    %v1357 = vld [vmem:[%s1355 + $0x8] sm:$0xff]
    %v1358 = vld [vmem:[%s1355 + $0x10] sm:$0xff]
    %v1359 = vld [vmem:[%s1355 + $0x18] sm:$0xff]
    %v1360 = vld [vmem:[%s1355 + $0x20] sm:$0xff]
    %v1361 = vld [vmem:[%s1355 + $0x28] sm:$0xff]
    %v1362 = vld [vmem:[%s1355 + $0x30] sm:$0xff]
    %v1363 = vld [vmem:[%s1355 + $0x38] sm:$0xff]
    %v1364 = vld [vmem:[%s1355 + $0x40] sm:$0xff]
    %v1365 = vld [vmem:[%s1355 + $0x48] sm:$0xff]
    %v1366 = vld [vmem:[%s1355 + $0x50] sm:$0xff]
    %v1367 = vld [vmem:[%s1355 + $0x58] sm:$0xff]
    %v1368 = vld [vmem:[%s1355 + $0x60] sm:$0xff]
    %v1369 = vld [vmem:[%s1355 + $0x68] sm:$0xff]
    %v1370 = vld [vmem:[%s1355 + $0x70] sm:$0xff]
    %v1371 = vld [vmem:[%s1355 + $0x78] sm:$0xff]
    %v1372 = vld [vmem:[%s1355 + $0x80] sm:$0xff]
    %v1373 = vld [vmem:[%s1355 + $0x88] sm:$0xff]
    %v1374 = vld [vmem:[%s1355 + $0x90] sm:$0xff]
    %v1375 = vld [vmem:[%s1355 + $0x98] sm:$0xff]
    %v1376 = vld [vmem:[%s1355 + $0xa0] sm:$0xff]
    %v1377 = vld [vmem:[%s1355 + $0xa8] sm:$0xff]
    %v1378 = vperm.slane %v1351, 0
    %v1379 = vperm.slane %v1353, 0
    %v1380 = vperm.slane %v1352, 7
    %v1381 = vperm.slane %v1354, 7
    %v1382 = vrot.slane %v1351, 3
    %v1383 = vrot.slane %v1352, 3
    %v1384 = vrot.slane %v1353, 3
    %v1385 = vrot.slane %v1354, 3
    %v1386 = vsel %vm64, %v1384, %v1385
    %v1387 = vsel %vm64, %v1383, %v1384
    %v1388 = vsel %vm64, %v1382, %v1383
    %v1389 = vsel %vm64, %v1385, %v1382
    %v1390 = vsel %vm64, %v1378, %v1389
    %v1391 = vsel %vm69, %v1378, %v1388
    %v1392 = vsel %vm64, %v1379, %v1387
    %v1393 = vsel %vm69, %v1379, %v1386
    %v1394 = vrot.slane %v1351, 4
    %v1395 = vrot.slane %v1352, 4
    %v1396 = vrot.slane %v1353, 4
    %v1397 = vrot.slane %v1354, 4
    %v1398 = vsel %vm78, %v1396, %v1397
    %v1399 = vsel %vm78, %v1395, %v1396
    %v1400 = vsel %vm78, %v1394, %v1395
    %v1401 = vsel %vm78, %v1397, %v1394
    %v1402 = vsel %vm78, %v1378, %v1401
    %v1403 = vsel %vm83, %v1378, %v1400
    %v1404 = vsel %vm78, %v1379, %v1399
    %v1405 = vsel %vm83, %v1379, %v1398
    %v1406 = vrot.slane %v1351, 5
    %v1407 = vrot.slane %v1352, 5
    %v1408 = vrot.slane %v1353, 5
    %v1409 = vrot.slane %v1354, 5
    %v1410 = vsel %vm92, %v1408, %v1409
    %v1411 = vsel %vm92, %v1407, %v1408
    %v1412 = vsel %vm92, %v1406, %v1407
    %v1413 = vsel %vm92, %v1409, %v1406
    %v1414 = vsel %vm92, %v1378, %v1413
    %v1415 = vsel %vm97, %v1378, %v1412
    %v1416 = vsel %vm92, %v1379, %v1411
    %v1417 = vsel %vm97, %v1379, %v1410
    %v1418 = vrot.slane %v1351, 6
    %v1419 = vrot.slane %v1352, 6
    %v1420 = vrot.slane %v1353, 6
    %v1421 = vrot.slane %v1354, 6
    %v1422 = vsel %vm106, %v1420, %v1421
    %v1423 = vsel %vm106, %v1419, %v1420
    %v1424 = vsel %vm106, %v1418, %v1419
    %v1425 = vsel %vm106, %v1421, %v1418
    %v1426 = vsel %vm106, %v1378, %v1425
    %v1427 = vsel %vm111, %v1378, %v1424
    %v1428 = vsel %vm106, %v1379, %v1423
    %v1429 = vsel %vm111, %v1379, %v1422
    %v1430 = vrot.slane %v1351, 7
    %v1431 = vrot.slane %v1352, 7
    %v1432 = vrot.slane %v1353, 7
    %v1433 = vrot.slane %v1354, 7
    %v1434 = vsel %vm120, %v1432, %v1433
    %v1435 = vsel %vm120, %v1431, %v1432
    %v1436 = vsel %vm120, %v1430, %v1431
    %v1437 = vsel %vm120, %v1433, %v1430
    %v1438 = vsel %vm120, %v1378, %v1437
    %v1439 = vsel %vm125, %v1378, %v1436
    %v1440 = vsel %vm120, %v1379, %v1435
    %v1441 = vsel %vm125, %v1379, %v1434
    %v1442 = vrot.slane %v1351, 1
    %v1443 = vrot.slane %v1352, 1
    %v1444 = vrot.slane %v1353, 1
    %v1445 = vrot.slane %v1354, 1
    %v1446 = vsel %vm134, %v1444, %v1445
    %v1447 = vsel %vm134, %v1443, %v1444
    %v1448 = vsel %vm134, %v1442, %v1443
    %v1449 = vsel %vm134, %v1445, %v1442
    %v1450 = vsel %vm139, %v1380, %v1448
    %v1451 = vsel %vm140, %v1380, %v1447
    %v1452 = vsel %vm139, %v1381, %v1446
    %v1453 = vsel %vm140, %v1381, %v1449
    %v1454 = vrot.slane %v1351, 2
    %v1455 = vrot.slane %v1352, 2
    %v1456 = vrot.slane %v1353, 2
    %v1457 = vrot.slane %v1354, 2
    %v1458 = vsel %vm149, %v1456, %v1457
    %v1459 = vsel %vm149, %v1455, %v1456
    %v1460 = vsel %vm149, %v1454, %v1455
    %v1461 = vsel %vm149, %v1457, %v1454
    %v1462 = vsel %vm154, %v1380, %v1460
    %v1463 = vsel %vm155, %v1380, %v1459
    %v1464 = vsel %vm154, %v1381, %v1458
    %v1465 = vsel %vm155, %v1381, %v1461
    %v1466 = vsel %vm160, %v1380, %v1388
    %v1467 = vsel %vm161, %v1380, %v1387
    %v1468 = vsel %vm160, %v1381, %v1386
    %v1469 = vsel %vm161, %v1381, %v1389
    %v1470 = vsel %vm166, %v1380, %v1400
    %v1471 = vsel %vm167, %v1380, %v1399
    %v1472 = vsel %vm166, %v1381, %v1398
    %v1473 = vsel %vm167, %v1381, %v1401
    %v1474 = vsel %vm172, %v1380, %v1412
    %v1475 = vsel %vm173, %v1380, %v1411
    %v1476 = vsel %vm172, %v1381, %v1410
    %v1477 = vsel %vm173, %v1381, %v1413
    %1482 = vrot.lane.b32.xlu0 %v1402, 16
    %v1483 = vpop.permute.xlu0 %1482
    %1484 = vrot.lane.b32.xlu0 %v1403, 16
    %v1485 = vpop.permute.xlu0 %1484
    %1486 = vrot.lane.b32.xlu0 %v1404, 16
    %v1487 = vpop.permute.xlu0 %1486
    %1488 = vrot.lane.b32.xlu0 %v1405, 16
    %v1489 = vpop.permute.xlu0 %1488
    %1498 = vrot.lane.b32.xlu0 %v1414, 32
    %v1499 = vpop.permute.xlu0 %1498
    %1500 = vrot.lane.b32.xlu0 %v1415, 32
    %v1501 = vpop.permute.xlu0 %1500
    %1502 = vrot.lane.b32.xlu0 %v1416, 32
    %v1503 = vpop.permute.xlu0 %1502
    %1504 = vrot.lane.b32.xlu0 %v1417, 32
    %v1505 = vpop.permute.xlu0 %1504
    %1514 = vrot.lane.b32.xlu0 %v1426, 48
    %v1515 = vpop.permute.xlu0 %1514
    %1516 = vrot.lane.b32.xlu0 %v1427, 48
    %v1517 = vpop.permute.xlu0 %1516
    %1518 = vrot.lane.b32.xlu0 %v1428, 48
    %v1519 = vpop.permute.xlu0 %1518
    %1520 = vrot.lane.b32.xlu0 %v1429, 48
    %v1521 = vpop.permute.xlu0 %1520
    %1530 = vrot.lane.b32.xlu0 %v1438, 64
    %v1531 = vpop.permute.xlu0 %1530
    %1532 = vrot.lane.b32.xlu0 %v1439, 64
    %v1533 = vpop.permute.xlu0 %1532
    %1534 = vrot.lane.b32.xlu0 %v1440, 64
    %v1535 = vpop.permute.xlu0 %1534
    %1536 = vrot.lane.b32.xlu0 %v1441, 64
    %v1537 = vpop.permute.xlu0 %1536
    %1546 = vrot.lane.b32.xlu0 %v1351, 80
    %v1547 = vpop.permute.xlu0 %1546
    %1548 = vrot.lane.b32.xlu0 %v1352, 80
    %v1549 = vpop.permute.xlu0 %1548
    %1550 = vrot.lane.b32.xlu0 %v1353, 80
    %v1551 = vpop.permute.xlu0 %1550
    %1552 = vrot.lane.b32.xlu0 %v1354, 80
    %v1553 = vpop.permute.xlu0 %1552
    %1562 = vrot.lane.b32.xlu0 %v1450, 96
    %v1563 = vpop.permute.xlu0 %1562
    %1564 = vrot.lane.b32.xlu0 %v1451, 96
    %v1565 = vpop.permute.xlu0 %1564
    %1566 = vrot.lane.b32.xlu0 %v1452, 96
    %v1567 = vpop.permute.xlu0 %1566
    %1568 = vrot.lane.b32.xlu0 %v1453, 96
    %v1569 = vpop.permute.xlu0 %1568
    %1578 = vrot.lane.b32.xlu0 %v1462, 112
    %v1579 = vpop.permute.xlu0 %1578
    %1580 = vrot.lane.b32.xlu0 %v1463, 112
    %v1581 = vpop.permute.xlu0 %1580
    %1582 = vrot.lane.b32.xlu0 %v1464, 112
    %v1583 = vpop.permute.xlu0 %1582
    %1584 = vrot.lane.b32.xlu0 %v1465, 112
    %v1585 = vpop.permute.xlu0 %1584
    %1594 = vrot.lane.b32.xlu0 %v1470, 16
    %v1595 = vpop.permute.xlu0 %1594
    %1596 = vrot.lane.b32.xlu0 %v1471, 16
    %v1597 = vpop.permute.xlu0 %1596
    %1598 = vrot.lane.b32.xlu0 %v1472, 16
    %v1599 = vpop.permute.xlu0 %1598
    %1600 = vrot.lane.b32.xlu0 %v1473, 16
    %v1601 = vpop.permute.xlu0 %1600
    %1610 = vrot.lane.b32.xlu0 %v1474, 32
    %v1611 = vpop.permute.xlu0 %1610
    %1612 = vrot.lane.b32.xlu0 %v1475, 32
    %v1613 = vpop.permute.xlu0 %1612
    %1614 = vrot.lane.b32.xlu0 %v1476, 32
    %v1615 = vpop.permute.xlu0 %1614
    %1616 = vrot.lane.b32.xlu0 %v1477, 32
    %v1617 = vpop.permute.xlu0 %1616
    %v1622 = vsel %vm322, %v1390, %v1483
    %v1623 = vsel %vm322, %v1391, %v1485
    %v1624 = vsel %vm322, %v1392, %v1487
    %v1625 = vsel %vm322, %v1393, %v1489
    %v1626 = vsel %vm327, %v1622, %v1499
    %v1627 = vsel %vm327, %v1623, %v1501
    %v1628 = vsel %vm327, %v1624, %v1503
    %v1629 = vsel %vm327, %v1625, %v1505
    %v1630 = vsel %vm332, %v1626, %v1515
    %v1631 = vsel %vm332, %v1627, %v1517
    %v1632 = vsel %vm332, %v1628, %v1519
    %v1633 = vsel %vm332, %v1629, %v1521
    %v1634 = vsel %vm337, %v1630, %v1531
    %v1635 = vsel %vm337, %v1631, %v1533
    %v1636 = vsel %vm337, %v1632, %v1535
    %v1637 = vsel %vm337, %v1633, %v1537
    %v1638 = vsel %vm342, %v1634, %v1547
    %v1639 = vsel %vm342, %v1635, %v1549
    %v1640 = vsel %vm342, %v1636, %v1551
    %v1641 = vsel %vm342, %v1637, %v1553
    %v1642 = vsel %vm347, %v1638, %v1563
    %v1643 = vsel %vm347, %v1639, %v1565
    %v1644 = vsel %vm347, %v1640, %v1567
    %v1645 = vsel %vm347, %v1641, %v1569
    %v1646 = vsel %vm352, %v1642, %v1579
    %v1647 = vsel %vm352, %v1643, %v1581
    %v1648 = vsel %vm352, %v1644, %v1583
    %v1649 = vsel %vm352, %v1645, %v1585
    %v1650 = vsel %vm322, %v1466, %v1595
    %v1651 = vsel %vm322, %v1467, %v1597
    %v1652 = vsel %vm322, %v1468, %v1599
    %v1653 = vsel %vm322, %v1469, %v1601
    %v1654 = vsel %vm327, %v1650, %v1611
    %v1655 = vsel %vm327, %v1651, %v1613
    %v1656 = vsel %vm327, %v1652, %v1615
    %v1657 = vsel %vm327, %v1653, %v1617
    %v1659 = vsel %vm332, %v1654, 0
    %v1662 = vsel %vm332, %v1655, 0
    %v1665 = vsel %vm332, %v1656, 0
    %v1668 = vsel %vm332, %v1657, 0
    %1670 = vmatpush.msra.mxu0 %v1371
    %1671 = vmatpush.msra.mxu0 %v1370
    %1672 = vmatpush.msra.mxu0 %v1369
    %1673 = vmatpush.msra.mxu0 %v1368
    %1674 = vmatpush.msra.mxu0 %v1367
    %1675 = vmatpush.msra.mxu0 %v1366
    %1676 = vmatpush.msra.mxu0 %v1365
    %1677 = vmatpush.msra.mxu0 %v1364
    %1678 = vmatpush.msra.mxu0 %v1363
    %1679 = vmatpush.msra.mxu0 %v1362
    %1680 = vmatpush.msra.mxu0 %v1361
    %1681 = vmatpush.msra.mxu0 %v1360
    %1682 = vmatpush.msra.mxu0 %v1359
    %1683 = vmatpush.msra.mxu0 %v1358
    %1684 = vmatpush.msra.mxu0 %v1357
    %1685 = vmatpush.msra.mxu0 %v1356
    %1686 = vmatmul.f32.gmra.mxu0 %v1646
    %v1687 = vpop.f32.mrf.mxu0
    %v1688 = vadd.f32 0.0, %v1687
    %1689 = vmatmul.f32.gmra.mxu0 %v1647
    %v1690 = vpop.f32.mrf.mxu0
    %v1691 = vadd.f32 0.0, %v1690
    %1692 = vmatmul.f32.gmra.mxu0 %v1648
    %v1693 = vpop.f32.mrf.mxu0
    %v1694 = vadd.f32 0.0, %v1693
    %1695 = vmatmul.f32.gmra.mxu0 %v1649
    %v1696 = vpop.f32.mrf.mxu0
    %v1697 = vadd.f32 0.0, %v1696
    %1698 = vdwg.mxu0
    %1699 = vmatpush.msra.mxu0 0.0
    %1700 = vmatpush.msra.mxu0 0.0
    %1701 = vmatpush.msra.mxu0 0.0
    %1702 = vmatpush.msra.mxu0 0.0
    %1703 = vmatpush.msra.mxu0 0.0
    %1704 = vmatpush.msra.mxu0 0.0
    %1705 = vmatpush.msra.mxu0 0.0
    %1706 = vmatpush.msra.mxu0 0.0
    %1707 = vmatpush.msra.mxu0 0.0
    %1708 = vmatpush.msra.mxu0 0.0
    %1709 = vmatpush.msra.mxu0 %v1377
    %1710 = vmatpush.msra.mxu0 %v1376
    %1711 = vmatpush.msra.mxu0 %v1375
    %1712 = vmatpush.msra.mxu0 %v1374
    %1713 = vmatpush.msra.mxu0 %v1373
    %1714 = vmatpush.msra.mxu0 %v1372
    %1715 = vmatmul.f32.gmra.mxu0 %v1659
    %v1716 = vpop.f32.mrf.mxu0
    %v1717 = vadd.f32 %v1688, %v1716
    %1718 = vmatmul.f32.gmra.mxu0 %v1662
    %v1719 = vpop.f32.mrf.mxu0
    %v1720 = vadd.f32 %v1691, %v1719
    %1721 = vmatmul.f32.gmra.mxu0 %v1665
    %v1722 = vpop.f32.mrf.mxu0
    %v1723 = vadd.f32 %v1694, %v1722
    %1724 = vmatmul.f32.gmra.mxu0 %v1668
    %v1725 = vpop.f32.mrf.mxu0
    %v1726 = vadd.f32 %v1697, %v1725
    %1727 = vdwg.mxu0
    %s1728 = scalar_lea.vmem %s2, 1
    %v1729 = vld [vmem:[%s1728] sm:$0x1]
    %s1730 = scalar_lea.vmem %s3, 1
    %v1731 = vld [vmem:[%s1730] sm:$0x1]
    %v1732 = vsel %vm322, %v1717, 0.0
    %v1733 = vsel %vm322, %v1720, 0.0
    %v1734 = vadd.f32 %v1732, %v1733
    %v1735 = vrot.slane %v1734, 4
    %v1736 = vadd.f32 %v1734, %v1735
    %v1737 = vrot.slane %v1736, 2
    %v1738 = vadd.f32 %v1736, %v1737
    %v1739 = vrot.slane %v1738, 1
    %v1740 = vadd.f32 %v1738, %v1739
    %v1741 = vsel %vm322, %v1723, 0.0
    %v1742 = vsel %vm322, %v1726, 0.0
    %v1743 = vadd.f32 %v1741, %v1742
    %v1744 = vrot.slane %v1743, 4
    %v1745 = vadd.f32 %v1743, %v1744
    %v1746 = vrot.slane %v1745, 2
    %v1747 = vadd.f32 %v1745, %v1746
    %v1748 = vrot.slane %v1747, 1
    %v1749 = vadd.f32 %v1747, %v1748
    %v1750 = vmul.f32 %v1717, %v1717
    %v1751 = vmul.f32 %v1720, %v1720
    %v1752 = vmul.f32 %v1723, %v1723
    %v1753 = vmul.f32 %v1726, %v1726
    %v1754 = vsel %vm322, %v1750, 0.0
    %v1755 = vsel %vm322, %v1751, 0.0
    %v1756 = vadd.f32 %v1754, %v1755
    %v1757 = vrot.slane %v1756, 4
    %v1758 = vadd.f32 %v1756, %v1757
    %v1759 = vrot.slane %v1758, 2
    %v1760 = vadd.f32 %v1758, %v1759
    %v1761 = vrot.slane %v1760, 1
    %v1762 = vadd.f32 %v1760, %v1761
    %v1763 = vsel %vm322, %v1752, 0.0
    %v1764 = vsel %vm322, %v1753, 0.0
    %v1765 = vadd.f32 %v1763, %v1764
    %v1766 = vrot.slane %v1765, 4
    %v1767 = vadd.f32 %v1765, %v1766
    %v1768 = vrot.slane %v1767, 2
    %v1769 = vadd.f32 %v1767, %v1768
    %v1770 = vrot.slane %v1769, 1
    %v1771 = vadd.f32 %v1769, %v1770
    %v1772 = vmul.f32 %v1740, 0.0625
    %v1773 = vmul.f32 %v1749, 0.0625
    %v1774 = vmul.f32 %v1762, 0.0625
    %v1775 = vmul.f32 %v1771, 0.0625
    %v1776 = vmul.f32 %v1772, %v1772
    %v1777 = vmul.f32 %v1773, %v1773
    %v1778 = vsub.f32 %v1774, %v1776
    %v1779 = vsub.f32 %v1775, %v1777
    %v1780 = vmax.f32 %v1778, 0.0
    %v1781 = vmax.f32 %v1779, 0.0
    %v1782 = vadd.f32 %v1780, 1e-05
    %v1783 = vadd.f32 %v1781, 1e-05
    %v1784 = vrsqrt.pop %v1782
    %v1785 = vmul.f32 %v1784, %v1782
    %v1786 = vmul.f32 %v1785, %v1784
    %v1787 = vmul.f32 0.5, %v1786
    %v1788 = vsub.f32 1.5, %v1787
    %v1789 = vmul.f32 %v1784, %v1788
    %vm1790 = vweird.f32 %v1782
    %vm1791 = vweird.f32 %v1784
    %vm1792 = vmor %vm1790, %vm1791
    %v1793 = vsel %vm1792, %v1784, %v1789
    %v1794 = vrsqrt.pop %v1783
    %v1795 = vmul.f32 %v1794, %v1783
    %v1796 = vmul.f32 %v1795, %v1794
    %v1797 = vmul.f32 0.5, %v1796
    %v1798 = vsub.f32 1.5, %v1797
    %v1799 = vmul.f32 %v1794, %v1798
    %vm1800 = vweird.f32 %v1783
    %vm1801 = vweird.f32 %v1794
    %vm1802 = vmor %vm1800, %vm1801
    %v1803 = vsel %vm1802, %v1794, %v1799
    %v1804 = vsub.f32 %v1717, %v1772
    %v1805 = vsub.f32 %v1720, %v1772
    %v1806 = vsub.f32 %v1723, %v1773
    %v1807 = vsub.f32 %v1726, %v1773
    %v1808 = vmul.f32 %v1804, %v1793
    %v1809 = vmul.f32 %v1805, %v1793
    %v1810 = vmul.f32 %v1806, %v1803
    %v1811 = vmul.f32 %v1807, %v1803
    %v1813 = vperm.slane %v1729, 0
    %v1815 = vmul.f32 %v1808, %v1813
    %v1816 = vmul.f32 %v1809, %v1813
    %v1817 = vmul.f32 %v1810, %v1813
    %v1818 = vmul.f32 %v1811, %v1813
    %v1820 = vperm.slane %v1731, 0
    %v1822 = vadd.f32 %v1815, %v1820
    %v1823 = vadd.f32 %v1816, %v1820
    %v1824 = vadd.f32 %v1817, %v1820
    %v1825 = vadd.f32 %v1818, %v1820
    %v1826 = vmul.f32 %v1822, 0.5
    %v1827 = vmul.f32 %v1823, 0.5
    %v1828 = vmul.f32 %v1824, 0.5
    %v1829 = vmul.f32 %v1825, 0.5
    %v1830 = vmul.f32 %v1822, 0.70710677
    %v1831 = vmul.f32 %v1823, 0.70710677
    %v1832 = vmul.f32 %v1824, 0.70710677
    %v1833 = vmul.f32 %v1825, 0.70710677
    %v1834 = vmul.f32 %v1830, %v1830
    %v1835 = vmin.f32 16.0, %v1834
    %v1836 = vmul.f32 %v1835, 2.1237322e-06
    %v1837 = vadd.f32 %v1836, 0.00028619796
    %v1838 = vmul.f32 %v1835, %v1837
    %v1839 = vadd.f32 %v1838, 0.0036580483
    %v1840 = vmul.f32 %v1835, %v1839
    %v1841 = vadd.f32 %v1840, 0.05243302
    %v1842 = vmul.f32 %v1835, %v1841
    %v1843 = vadd.f32 %v1842, 0.18741608
    %v1844 = vmul.f32 %v1835, %v1843
    %v1845 = vadd.f32 %v1844, 1.1283791
    %v1846 = vmul.f32 %v1830, %v1845
    %v1847 = vmul.f32 %v1835, 3.8918573e-05
    %v1848 = vadd.f32 %v1847, 0.001143296
    %v1849 = vmul.f32 %v1835, %v1848
    %v1850 = vadd.f32 %v1849, 0.014752088
    %v1851 = vmul.f32 %v1835, %v1850
    %v1852 = vadd.f32 %v1851, 0.112945676
    %v1853 = vmul.f32 %v1835, %v1852
    %v1854 = vadd.f32 %v1853, 0.4994258
    %v1855 = vmul.f32 %v1835, %v1854
    %v1856 = vadd.f32 %v1855, 1.0
    %v1857 = vrcp.pop %v1856
    %v1858 = vmul.f32 %v1856, %v1857
    %v1859 = vsub.f32 1.0, %v1858
    %v1860 = vmul.f32 %v1857, %v1859
    %v1861 = vadd.f32 %v1857, %v1860
    %vm1862 = vweird.f32 %v1856
    %vm1863 = vweird.f32 %v1857
    %vm1864 = vmor %vm1862, %vm1863
    %v1865 = vsel %vm1864, %v1857, %v1861
    %v1866 = vand.u32 2147483647, %v1856
    %vm1867 = vcmp.eq.f32.partialorder %v1866, 8.507059e+37
    %v1868 = vand.u32 %v1856, 2147483648
    %v1869 = vor.u32 1.1754944e-38, %v1868
    %v1870 = vsel %vm1867, %v1869, %v1865
    %v1871 = vmul.f32 %v1846, %v1870
    %v1872 = vmin.f32 %v1871, 1.0
    %v1873 = vmax.f32 %v1872, -1.0
    %v1874 = vmul.f32 %v1831, %v1831
    %v1875 = vmin.f32 16.0, %v1874
    %v1876 = vmul.f32 %v1875, 2.1237322e-06
    %v1877 = vadd.f32 %v1876, 0.00028619796
    %v1878 = vmul.f32 %v1875, %v1877
    %v1879 = vadd.f32 %v1878, 0.0036580483
    %v1880 = vmul.f32 %v1875, %v1879
    %v1881 = vadd.f32 %v1880, 0.05243302
    %v1882 = vmul.f32 %v1875, %v1881
    %v1883 = vadd.f32 %v1882, 0.18741608
    %v1884 = vmul.f32 %v1875, %v1883
    %v1885 = vadd.f32 %v1884, 1.1283791
    %v1886 = vmul.f32 %v1831, %v1885
    %v1887 = vmul.f32 %v1875, 3.8918573e-05
    %v1888 = vadd.f32 %v1887, 0.001143296
    %v1889 = vmul.f32 %v1875, %v1888
    %v1890 = vadd.f32 %v1889, 0.014752088
    %v1891 = vmul.f32 %v1875, %v1890
    %v1892 = vadd.f32 %v1891, 0.112945676
    %v1893 = vmul.f32 %v1875, %v1892
    %v1894 = vadd.f32 %v1893, 0.4994258
    %v1895 = vmul.f32 %v1875, %v1894
    %v1896 = vadd.f32 %v1895, 1.0
    %v1897 = vrcp.pop %v1896
    %v1898 = vmul.f32 %v1896, %v1897
    %v1899 = vsub.f32 1.0, %v1898
    %v1900 = vmul.f32 %v1897, %v1899
    %v1901 = vadd.f32 %v1897, %v1900
    %vm1902 = vweird.f32 %v1896
    %vm1903 = vweird.f32 %v1897
    %vm1904 = vmor %vm1902, %vm1903
    %v1905 = vsel %vm1904, %v1897, %v1901
    %v1906 = vand.u32 2147483647, %v1896
    %vm1907 = vcmp.eq.f32.partialorder %v1906, 8.507059e+37
    %v1908 = vand.u32 %v1896, 2147483648
    %v1909 = vor.u32 1.1754944e-38, %v1908
    %v1910 = vsel %vm1907, %v1909, %v1905
    %v1911 = vmul.f32 %v1886, %v1910
    %v1912 = vmin.f32 %v1911, 1.0
    %v1913 = vmax.f32 %v1912, -1.0
    %v1914 = vmul.f32 %v1832, %v1832
    %v1915 = vmin.f32 16.0, %v1914
    %v1916 = vmul.f32 %v1915, 2.1237322e-06
    %v1917 = vadd.f32 %v1916, 0.00028619796
    %v1918 = vmul.f32 %v1915, %v1917
    %v1919 = vadd.f32 %v1918, 0.0036580483
    %v1920 = vmul.f32 %v1915, %v1919
    %v1921 = vadd.f32 %v1920, 0.05243302
    %v1922 = vmul.f32 %v1915, %v1921
    %v1923 = vadd.f32 %v1922, 0.18741608
    %v1924 = vmul.f32 %v1915, %v1923
    %v1925 = vadd.f32 %v1924, 1.1283791
    %v1926 = vmul.f32 %v1832, %v1925
    %v1927 = vmul.f32 %v1915, 3.8918573e-05
    %v1928 = vadd.f32 %v1927, 0.001143296
    %v1929 = vmul.f32 %v1915, %v1928
    %v1930 = vadd.f32 %v1929, 0.014752088
    %v1931 = vmul.f32 %v1915, %v1930
    %v1932 = vadd.f32 %v1931, 0.112945676
    %v1933 = vmul.f32 %v1915, %v1932
    %v1934 = vadd.f32 %v1933, 0.4994258
    %v1935 = vmul.f32 %v1915, %v1934
    %v1936 = vadd.f32 %v1935, 1.0
    %v1937 = vrcp.pop %v1936
    %v1938 = vmul.f32 %v1936, %v1937
    %v1939 = vsub.f32 1.0, %v1938
    %v1940 = vmul.f32 %v1937, %v1939
    %v1941 = vadd.f32 %v1937, %v1940
    %vm1942 = vweird.f32 %v1936
    %vm1943 = vweird.f32 %v1937
    %vm1944 = vmor %vm1942, %vm1943
    %v1945 = vsel %vm1944, %v1937, %v1941
    %v1946 = vand.u32 2147483647, %v1936
    %vm1947 = vcmp.eq.f32.partialorder %v1946, 8.507059e+37
    %v1948 = vand.u32 %v1936, 2147483648
    %v1949 = vor.u32 1.1754944e-38, %v1948
    %v1950 = vsel %vm1947, %v1949, %v1945
    %v1951 = vmul.f32 %v1926, %v1950
    %v1952 = vmin.f32 %v1951, 1.0
    %v1953 = vmax.f32 %v1952, -1.0
    %v1954 = vmul.f32 %v1833, %v1833
    %v1955 = vmin.f32 16.0, %v1954
    %v1956 = vmul.f32 %v1955, 2.1237322e-06
    %v1957 = vadd.f32 %v1956, 0.00028619796
    %v1958 = vmul.f32 %v1955, %v1957
    %v1959 = vadd.f32 %v1958, 0.0036580483
    %v1960 = vmul.f32 %v1955, %v1959
    %v1961 = vadd.f32 %v1960, 0.05243302
    %v1962 = vmul.f32 %v1955, %v1961
    %v1963 = vadd.f32 %v1962, 0.18741608
    %v1964 = vmul.f32 %v1955, %v1963
    %v1965 = vadd.f32 %v1964, 1.1283791
    %v1966 = vmul.f32 %v1833, %v1965
    %v1967 = vmul.f32 %v1955, 3.8918573e-05
    %v1968 = vadd.f32 %v1967, 0.001143296
    %v1969 = vmul.f32 %v1955, %v1968
    %v1970 = vadd.f32 %v1969, 0.014752088
    %v1971 = vmul.f32 %v1955, %v1970
    %v1972 = vadd.f32 %v1971, 0.112945676
    %v1973 = vmul.f32 %v1955, %v1972
    %v1974 = vadd.f32 %v1973, 0.4994258
    %v1975 = vmul.f32 %v1955, %v1974
    %v1976 = vadd.f32 %v1975, 1.0
    %v1977 = vrcp.pop %v1976
    %v1978 = vmul.f32 %v1976, %v1977
    %v1979 = vsub.f32 1.0, %v1978
    %v1980 = vmul.f32 %v1977, %v1979
    %v1981 = vadd.f32 %v1977, %v1980
    %vm1982 = vweird.f32 %v1976
    %vm1983 = vweird.f32 %v1977
    %vm1984 = vmor %vm1982, %vm1983
    %v1985 = vsel %vm1984, %v1977, %v1981
    %v1986 = vand.u32 2147483647, %v1976
    %vm1987 = vcmp.eq.f32.partialorder %v1986, 8.507059e+37
    %v1988 = vand.u32 %v1976, 2147483648
    %v1989 = vor.u32 1.1754944e-38, %v1988
    %v1990 = vsel %vm1987, %v1989, %v1985
    %v1991 = vmul.f32 %v1966, %v1990
    %v1992 = vmin.f32 %v1991, 1.0
    %v1993 = vmax.f32 %v1992, -1.0
    %v1994 = vadd.f32 %v1873, 1.0
    %v1995 = vadd.f32 %v1913, 1.0
    %v1996 = vadd.f32 %v1953, 1.0
    %v1997 = vadd.f32 %v1993, 1.0
    %v1998 = vmul.f32 %v1826, %v1994
    %v1999 = vmul.f32 %v1827, %v1995
    %v2000 = vmul.f32 %v1828, %v1996
    %v2001 = vmul.f32 %v1829, %v1997
    %s2002 = scalar_lea.vmem %s4, 176
    %v2003 = vld [vmem:[%s2002] sm:$0xff]
    %v2004 = vld [vmem:[%s2002 + $0x8] sm:$0xff]
    %v2005 = vld [vmem:[%s2002 + $0x10] sm:$0xff]
    %v2006 = vld [vmem:[%s2002 + $0x18] sm:$0xff]
    %v2007 = vld [vmem:[%s2002 + $0x20] sm:$0xff]
    %v2008 = vld [vmem:[%s2002 + $0x28] sm:$0xff]
    %v2009 = vld [vmem:[%s2002 + $0x30] sm:$0xff]
    %v2010 = vld [vmem:[%s2002 + $0x38] sm:$0xff]
    %v2011 = vld [vmem:[%s2002 + $0x40] sm:$0xff]
    %v2012 = vld [vmem:[%s2002 + $0x48] sm:$0xff]
    %v2013 = vld [vmem:[%s2002 + $0x50] sm:$0xff]
    %v2014 = vld [vmem:[%s2002 + $0x58] sm:$0xff]
    %v2015 = vld [vmem:[%s2002 + $0x60] sm:$0xff]
    %v2016 = vld [vmem:[%s2002 + $0x68] sm:$0xff]
    %v2017 = vld [vmem:[%s2002 + $0x70] sm:$0xff]
    %v2018 = vld [vmem:[%s2002 + $0x78] sm:$0xff]
    %v2019 = vld [vmem:[%s2002 + $0x80] sm:$0xff]
    %v2020 = vld [vmem:[%s2002 + $0x88] sm:$0xff]
    %v2021 = vld [vmem:[%s2002 + $0x90] sm:$0xff]
    %v2022 = vld [vmem:[%s2002 + $0x98] sm:$0xff]
    %v2023 = vld [vmem:[%s2002 + $0xa0] sm:$0xff]
    %v2024 = vld [vmem:[%s2002 + $0xa8] sm:$0xff]
    %v2025 = vperm.slane %v1998, 0
    %v2026 = vperm.slane %v2000, 0
    %v2027 = vperm.slane %v1999, 7
    %v2028 = vperm.slane %v2001, 7
    %v2029 = vrot.slane %v1998, 3
    %v2030 = vrot.slane %v1999, 3
    %v2031 = vrot.slane %v2000, 3
    %v2032 = vrot.slane %v2001, 3
    %v2033 = vsel %vm64, %v2031, %v2032
    %v2034 = vsel %vm64, %v2030, %v2031
    %v2035 = vsel %vm64, %v2029, %v2030
    %v2036 = vsel %vm64, %v2032, %v2029
    %v2037 = vsel %vm64, %v2025, %v2036
    %v2038 = vsel %vm69, %v2025, %v2035
    %v2039 = vsel %vm64, %v2026, %v2034
    %v2040 = vsel %vm69, %v2026, %v2033
    %v2041 = vrot.slane %v1998, 4
    %v2042 = vrot.slane %v1999, 4
    %v2043 = vrot.slane %v2000, 4
    %v2044 = vrot.slane %v2001, 4
    %v2045 = vsel %vm78, %v2043, %v2044
    %v2046 = vsel %vm78, %v2042, %v2043
    %v2047 = vsel %vm78, %v2041, %v2042
    %v2048 = vsel %vm78, %v2044, %v2041
    %v2049 = vsel %vm78, %v2025, %v2048
    %v2050 = vsel %vm83, %v2025, %v2047
    %v2051 = vsel %vm78, %v2026, %v2046
    %v2052 = vsel %vm83, %v2026, %v2045
    %v2053 = vrot.slane %v1998, 5
    %v2054 = vrot.slane %v1999, 5
    %v2055 = vrot.slane %v2000, 5
    %v2056 = vrot.slane %v2001, 5
    %v2057 = vsel %vm92, %v2055, %v2056
    %v2058 = vsel %vm92, %v2054, %v2055
    %v2059 = vsel %vm92, %v2053, %v2054
    %v2060 = vsel %vm92, %v2056, %v2053
    %v2061 = vsel %vm92, %v2025, %v2060
    %v2062 = vsel %vm97, %v2025, %v2059
    %v2063 = vsel %vm92, %v2026, %v2058
    %v2064 = vsel %vm97, %v2026, %v2057
    %v2065 = vrot.slane %v1998, 6
    %v2066 = vrot.slane %v1999, 6
    %v2067 = vrot.slane %v2000, 6
    %v2068 = vrot.slane %v2001, 6
    %v2069 = vsel %vm106, %v2067, %v2068
    %v2070 = vsel %vm106, %v2066, %v2067
    %v2071 = vsel %vm106, %v2065, %v2066
    %v2072 = vsel %vm106, %v2068, %v2065
    %v2073 = vsel %vm106, %v2025, %v2072
    %v2074 = vsel %vm111, %v2025, %v2071
    %v2075 = vsel %vm106, %v2026, %v2070
    %v2076 = vsel %vm111, %v2026, %v2069
    %v2077 = vrot.slane %v1998, 7
    %v2078 = vrot.slane %v1999, 7
    %v2079 = vrot.slane %v2000, 7
    %v2080 = vrot.slane %v2001, 7
    %v2081 = vsel %vm120, %v2079, %v2080
    %v2082 = vsel %vm120, %v2078, %v2079
    %v2083 = vsel %vm120, %v2077, %v2078
    %v2084 = vsel %vm120, %v2080, %v2077
    %v2085 = vsel %vm120, %v2025, %v2084
    %v2086 = vsel %vm125, %v2025, %v2083
    %v2087 = vsel %vm120, %v2026, %v2082
    %v2088 = vsel %vm125, %v2026, %v2081
    %v2089 = vrot.slane %v1998, 1
    %v2090 = vrot.slane %v1999, 1
    %v2091 = vrot.slane %v2000, 1
    %v2092 = vrot.slane %v2001, 1
    %v2093 = vsel %vm134, %v2091, %v2092
    %v2094 = vsel %vm134, %v2090, %v2091
    %v2095 = vsel %vm134, %v2089, %v2090
    %v2096 = vsel %vm134, %v2092, %v2089
    %v2097 = vsel %vm139, %v2027, %v2095
    %v2098 = vsel %vm140, %v2027, %v2094
    %v2099 = vsel %vm139, %v2028, %v2093
    %v2100 = vsel %vm140, %v2028, %v2096
    %v2101 = vrot.slane %v1998, 2
    %v2102 = vrot.slane %v1999, 2
    %v2103 = vrot.slane %v2000, 2
    %v2104 = vrot.slane %v2001, 2
    %v2105 = vsel %vm149, %v2103, %v2104
    %v2106 = vsel %vm149, %v2102, %v2103
    %v2107 = vsel %vm149, %v2101, %v2102
    %v2108 = vsel %vm149, %v2104, %v2101
    %v2109 = vsel %vm154, %v2027, %v2107
    %v2110 = vsel %vm155, %v2027, %v2106
    %v2111 = vsel %vm154, %v2028, %v2105
    %v2112 = vsel %vm155, %v2028, %v2108
    %v2113 = vsel %vm160, %v2027, %v2035
    %v2114 = vsel %vm161, %v2027, %v2034
    %v2115 = vsel %vm160, %v2028, %v2033
    %v2116 = vsel %vm161, %v2028, %v2036
    %v2117 = vsel %vm166, %v2027, %v2047
    %v2118 = vsel %vm167, %v2027, %v2046
    %v2119 = vsel %vm166, %v2028, %v2045
    %v2120 = vsel %vm167, %v2028, %v2048
    %v2121 = vsel %vm172, %v2027, %v2059
    %v2122 = vsel %vm173, %v2027, %v2058
    %v2123 = vsel %vm172, %v2028, %v2057
    %v2124 = vsel %vm173, %v2028, %v2060
    %2129 = vrot.lane.b32.xlu0 %v2049, 16
    %v2130 = vpop.permute.xlu0 %2129
    %2131 = vrot.lane.b32.xlu0 %v2050, 16
    %v2132 = vpop.permute.xlu0 %2131
    %2133 = vrot.lane.b32.xlu0 %v2051, 16
    %v2134 = vpop.permute.xlu0 %2133
    %2135 = vrot.lane.b32.xlu0 %v2052, 16
    %v2136 = vpop.permute.xlu0 %2135
    %2145 = vrot.lane.b32.xlu0 %v2061, 32
    %v2146 = vpop.permute.xlu0 %2145
    %2147 = vrot.lane.b32.xlu0 %v2062, 32
    %v2148 = vpop.permute.xlu0 %2147
    %2149 = vrot.lane.b32.xlu0 %v2063, 32
    %v2150 = vpop.permute.xlu0 %2149
    %2151 = vrot.lane.b32.xlu0 %v2064, 32
    %v2152 = vpop.permute.xlu0 %2151
    %2161 = vrot.lane.b32.xlu0 %v2073, 48
    %v2162 = vpop.permute.xlu0 %2161
    %2163 = vrot.lane.b32.xlu0 %v2074, 48
    %v2164 = vpop.permute.xlu0 %2163
    %2165 = vrot.lane.b32.xlu0 %v2075, 48
    %v2166 = vpop.permute.xlu0 %2165
    %2167 = vrot.lane.b32.xlu0 %v2076, 48
    %v2168 = vpop.permute.xlu0 %2167
    %2177 = vrot.lane.b32.xlu0 %v2085, 64
    %v2178 = vpop.permute.xlu0 %2177
    %2179 = vrot.lane.b32.xlu0 %v2086, 64
    %v2180 = vpop.permute.xlu0 %2179
    %2181 = vrot.lane.b32.xlu0 %v2087, 64
    %v2182 = vpop.permute.xlu0 %2181
    %2183 = vrot.lane.b32.xlu0 %v2088, 64
    %v2184 = vpop.permute.xlu0 %2183
    %2193 = vrot.lane.b32.xlu0 %v1998, 80
    %v2194 = vpop.permute.xlu0 %2193
    %2195 = vrot.lane.b32.xlu0 %v1999, 80
    %v2196 = vpop.permute.xlu0 %2195
    %2197 = vrot.lane.b32.xlu0 %v2000, 80
    %v2198 = vpop.permute.xlu0 %2197
    %2199 = vrot.lane.b32.xlu0 %v2001, 80
    %v2200 = vpop.permute.xlu0 %2199
    %2209 = vrot.lane.b32.xlu0 %v2097, 96
    %v2210 = vpop.permute.xlu0 %2209
    %2211 = vrot.lane.b32.xlu0 %v2098, 96
    %v2212 = vpop.permute.xlu0 %2211
    %2213 = vrot.lane.b32.xlu0 %v2099, 96
    %v2214 = vpop.permute.xlu0 %2213
    %2215 = vrot.lane.b32.xlu0 %v2100, 96
    %v2216 = vpop.permute.xlu0 %2215
    %2225 = vrot.lane.b32.xlu0 %v2109, 112
    %v2226 = vpop.permute.xlu0 %2225
    %2227 = vrot.lane.b32.xlu0 %v2110, 112
    %v2228 = vpop.permute.xlu0 %2227
    %2229 = vrot.lane.b32.xlu0 %v2111, 112
    %v2230 = vpop.permute.xlu0 %2229
    %2231 = vrot.lane.b32.xlu0 %v2112, 112
    %v2232 = vpop.permute.xlu0 %2231
    %2241 = vrot.lane.b32.xlu0 %v2117, 16
    %v2242 = vpop.permute.xlu0 %2241
    %2243 = vrot.lane.b32.xlu0 %v2118, 16
    %v2244 = vpop.permute.xlu0 %2243
    %2245 = vrot.lane.b32.xlu0 %v2119, 16
    %v2246 = vpop.permute.xlu0 %2245
    %2247 = vrot.lane.b32.xlu0 %v2120, 16
    %v2248 = vpop.permute.xlu0 %2247
    %2257 = vrot.lane.b32.xlu0 %v2121, 32
    %v2258 = vpop.permute.xlu0 %2257
    %2259 = vrot.lane.b32.xlu0 %v2122, 32
    %v2260 = vpop.permute.xlu0 %2259
    %2261 = vrot.lane.b32.xlu0 %v2123, 32
    %v2262 = vpop.permute.xlu0 %2261
    %2263 = vrot.lane.b32.xlu0 %v2124, 32
    %v2264 = vpop.permute.xlu0 %2263
    %v2269 = vsel %vm322, %v2037, %v2130
    %v2270 = vsel %vm322, %v2038, %v2132
    %v2271 = vsel %vm322, %v2039, %v2134
    %v2272 = vsel %vm322, %v2040, %v2136
    %v2273 = vsel %vm327, %v2269, %v2146
    %v2274 = vsel %vm327, %v2270, %v2148
    %v2275 = vsel %vm327, %v2271, %v2150
    %v2276 = vsel %vm327, %v2272, %v2152
    %v2277 = vsel %vm332, %v2273, %v2162
    %v2278 = vsel %vm332, %v2274, %v2164
    %v2279 = vsel %vm332, %v2275, %v2166
    %v2280 = vsel %vm332, %v2276, %v2168
    %v2281 = vsel %vm337, %v2277, %v2178
    %v2282 = vsel %vm337, %v2278, %v2180
    %v2283 = vsel %vm337, %v2279, %v2182
    %v2284 = vsel %vm337, %v2280, %v2184
    %v2285 = vsel %vm342, %v2281, %v2194
    %v2286 = vsel %vm342, %v2282, %v2196
    %v2287 = vsel %vm342, %v2283, %v2198
    %v2288 = vsel %vm342, %v2284, %v2200
    %v2289 = vsel %vm347, %v2285, %v2210
    %v2290 = vsel %vm347, %v2286, %v2212
    %v2291 = vsel %vm347, %v2287, %v2214
    %v2292 = vsel %vm347, %v2288, %v2216
    %v2293 = vsel %vm352, %v2289, %v2226
    %v2294 = vsel %vm352, %v2290, %v2228
    %v2295 = vsel %vm352, %v2291, %v2230
    %v2296 = vsel %vm352, %v2292, %v2232
    %v2297 = vsel %vm322, %v2113, %v2242
    %v2298 = vsel %vm322, %v2114, %v2244
    %v2299 = vsel %vm322, %v2115, %v2246
    %v2300 = vsel %vm322, %v2116, %v2248
    %v2301 = vsel %vm327, %v2297, %v2258
    %v2302 = vsel %vm327, %v2298, %v2260
    %v2303 = vsel %vm327, %v2299, %v2262
    %v2304 = vsel %vm327, %v2300, %v2264
    %v2306 = vsel %vm332, %v2301, 0
    %v2309 = vsel %vm332, %v2302, 0
    %v2312 = vsel %vm332, %v2303, 0
    %v2315 = vsel %vm332, %v2304, 0
    %2317 = vmatpush.msra.mxu0 %v2018
    %2318 = vmatpush.msra.mxu0 %v2017
    %2319 = vmatpush.msra.mxu0 %v2016
    %2320 = vmatpush.msra.mxu0 %v2015
    %2321 = vmatpush.msra.mxu0 %v2014
    %2322 = vmatpush.msra.mxu0 %v2013
    %2323 = vmatpush.msra.mxu0 %v2012
    %2324 = vmatpush.msra.mxu0 %v2011
    %2325 = vmatpush.msra.mxu0 %v2010
    %2326 = vmatpush.msra.mxu0 %v2009
    %2327 = vmatpush.msra.mxu0 %v2008
    %2328 = vmatpush.msra.mxu0 %v2007
    %2329 = vmatpush.msra.mxu0 %v2006
    %2330 = vmatpush.msra.mxu0 %v2005
    %2331 = vmatpush.msra.mxu0 %v2004
    %2332 = vmatpush.msra.mxu0 %v2003
    %2333 = vmatmul.f32.gmra.mxu0 %v2293
    %v2334 = vpop.f32.mrf.mxu0
    %v2335 = vadd.f32 0.0, %v2334
    %2336 = vmatmul.f32.gmra.mxu0 %v2294
    %v2337 = vpop.f32.mrf.mxu0
    %v2338 = vadd.f32 0.0, %v2337
    %2339 = vmatmul.f32.gmra.mxu0 %v2295
    %v2340 = vpop.f32.mrf.mxu0
    %v2341 = vadd.f32 0.0, %v2340
    %2342 = vmatmul.f32.gmra.mxu0 %v2296
    %v2343 = vpop.f32.mrf.mxu0
    %v2344 = vadd.f32 0.0, %v2343
    %2345 = vdwg.mxu0
    %2346 = vmatpush.msra.mxu0 0.0
    %2347 = vmatpush.msra.mxu0 0.0
    %2348 = vmatpush.msra.mxu0 0.0
    %2349 = vmatpush.msra.mxu0 0.0
    %2350 = vmatpush.msra.mxu0 0.0
    %2351 = vmatpush.msra.mxu0 0.0
    %2352 = vmatpush.msra.mxu0 0.0
    %2353 = vmatpush.msra.mxu0 0.0
    %2354 = vmatpush.msra.mxu0 0.0
    %2355 = vmatpush.msra.mxu0 0.0
    %2356 = vmatpush.msra.mxu0 %v2024
    %2357 = vmatpush.msra.mxu0 %v2023
    %2358 = vmatpush.msra.mxu0 %v2022
    %2359 = vmatpush.msra.mxu0 %v2021
    %2360 = vmatpush.msra.mxu0 %v2020
    %2361 = vmatpush.msra.mxu0 %v2019
    %2362 = vmatmul.f32.gmra.mxu0 %v2306
    %v2363 = vpop.f32.mrf.mxu0
    %v2364 = vadd.f32 %v2335, %v2363
    %2365 = vmatmul.f32.gmra.mxu0 %v2309
    %v2366 = vpop.f32.mrf.mxu0
    %v2367 = vadd.f32 %v2338, %v2366
    %2368 = vmatmul.f32.gmra.mxu0 %v2312
    %v2369 = vpop.f32.mrf.mxu0
    %v2370 = vadd.f32 %v2341, %v2369
    %2371 = vmatmul.f32.gmra.mxu0 %v2315
    %v2372 = vpop.f32.mrf.mxu0
    %v2373 = vadd.f32 %v2344, %v2372
    %2374 = vdwg.mxu0
    %s2375 = scalar_lea.vmem %s5, 1
    %v2376 = vld [vmem:[%s2375] sm:$0x1]
    %s2377 = scalar_lea.vmem %s6, 1
    %v2378 = vld [vmem:[%s2377] sm:$0x1]
    %v2379 = vsel %vm322, %v2364, 0.0
    %v2380 = vsel %vm322, %v2367, 0.0
    %v2381 = vadd.f32 %v2379, %v2380
    %v2382 = vrot.slane %v2381, 4
    %v2383 = vadd.f32 %v2381, %v2382
    %v2384 = vrot.slane %v2383, 2
    %v2385 = vadd.f32 %v2383, %v2384
    %v2386 = vrot.slane %v2385, 1
    %v2387 = vadd.f32 %v2385, %v2386
    %v2388 = vsel %vm322, %v2370, 0.0
    %v2389 = vsel %vm322, %v2373, 0.0
    %v2390 = vadd.f32 %v2388, %v2389
    %v2391 = vrot.slane %v2390, 4
    %v2392 = vadd.f32 %v2390, %v2391
    %v2393 = vrot.slane %v2392, 2
    %v2394 = vadd.f32 %v2392, %v2393
    %v2395 = vrot.slane %v2394, 1
    %v2396 = vadd.f32 %v2394, %v2395
    %v2397 = vmul.f32 %v2364, %v2364
    %v2398 = vmul.f32 %v2367, %v2367
    %v2399 = vmul.f32 %v2370, %v2370
    %v2400 = vmul.f32 %v2373, %v2373
    %v2401 = vsel %vm322, %v2397, 0.0
    %v2402 = vsel %vm322, %v2398, 0.0
    %v2403 = vadd.f32 %v2401, %v2402
    %v2404 = vrot.slane %v2403, 4
    %v2405 = vadd.f32 %v2403, %v2404
    %v2406 = vrot.slane %v2405, 2
    %v2407 = vadd.f32 %v2405, %v2406
    %v2408 = vrot.slane %v2407, 1
    %v2409 = vadd.f32 %v2407, %v2408
    %v2410 = vsel %vm322, %v2399, 0.0
    %v2411 = vsel %vm322, %v2400, 0.0
    %v2412 = vadd.f32 %v2410, %v2411
    %v2413 = vrot.slane %v2412, 4
    %v2414 = vadd.f32 %v2412, %v2413
    %v2415 = vrot.slane %v2414, 2
    %v2416 = vadd.f32 %v2414, %v2415
    %v2417 = vrot.slane %v2416, 1
    %v2418 = vadd.f32 %v2416, %v2417
    %v2419 = vmul.f32 %v2387, 0.0625
    %v2420 = vmul.f32 %v2396, 0.0625
    %v2421 = vmul.f32 %v2409, 0.0625
    %v2422 = vmul.f32 %v2418, 0.0625
    %v2423 = vmul.f32 %v2419, %v2419
    %v2424 = vmul.f32 %v2420, %v2420
    %v2425 = vsub.f32 %v2421, %v2423
    %v2426 = vsub.f32 %v2422, %v2424
    %v2427 = vmax.f32 %v2425, 0.0
    %v2428 = vmax.f32 %v2426, 0.0
    %v2429 = vadd.f32 %v2427, 1e-05
    %v2430 = vadd.f32 %v2428, 1e-05
    %v2431 = vrsqrt.pop %v2429
    %v2432 = vmul.f32 %v2431, %v2429
    %v2433 = vmul.f32 %v2432, %v2431
    %v2434 = vmul.f32 0.5, %v2433
    %v2435 = vsub.f32 1.5, %v2434
    %v2436 = vmul.f32 %v2431, %v2435
    %vm2437 = vweird.f32 %v2429
    %vm2438 = vweird.f32 %v2431
    %vm2439 = vmor %vm2437, %vm2438
    %v2440 = vsel %vm2439, %v2431, %v2436
    %v2441 = vrsqrt.pop %v2430
    %v2442 = vmul.f32 %v2441, %v2430
    %v2443 = vmul.f32 %v2442, %v2441
    %v2444 = vmul.f32 0.5, %v2443
    %v2445 = vsub.f32 1.5, %v2444
    %v2446 = vmul.f32 %v2441, %v2445
    %vm2447 = vweird.f32 %v2430
    %vm2448 = vweird.f32 %v2441
    %vm2449 = vmor %vm2447, %vm2448
    %v2450 = vsel %vm2449, %v2441, %v2446
    %v2451 = vsub.f32 %v2364, %v2419
    %v2452 = vsub.f32 %v2367, %v2419
    %v2453 = vsub.f32 %v2370, %v2420
    %v2454 = vsub.f32 %v2373, %v2420
    %v2455 = vmul.f32 %v2451, %v2440
    %v2456 = vmul.f32 %v2452, %v2440
    %v2457 = vmul.f32 %v2453, %v2450
    %v2458 = vmul.f32 %v2454, %v2450
    %v2460 = vperm.slane %v2376, 0
    %v2462 = vmul.f32 %v2455, %v2460
    %v2463 = vmul.f32 %v2456, %v2460
    %v2464 = vmul.f32 %v2457, %v2460
    %v2465 = vmul.f32 %v2458, %v2460
    %v2467 = vperm.slane %v2378, 0
    %v2469 = vadd.f32 %v2462, %v2467
    %v2470 = vadd.f32 %v2463, %v2467
    %v2471 = vadd.f32 %v2464, %v2467
    %v2472 = vadd.f32 %v2465, %v2467
    %v2473 = vadd.f32 %v1351, %v2469
    %v2474 = vadd.f32 %v1352, %v2470
    %v2475 = vadd.f32 %v1353, %v2471
    %v2476 = vadd.f32 %v1354, %v2472
    %v2477 = vmul.f32 %v2473, 0.5
    %v2478 = vmul.f32 %v2474, 0.5
    %v2479 = vmul.f32 %v2475, 0.5
    %v2480 = vmul.f32 %v2476, 0.5
    %v2481 = vmul.f32 %v2473, 0.70710677
    %v2482 = vmul.f32 %v2474, 0.70710677
    %v2483 = vmul.f32 %v2475, 0.70710677
    %v2484 = vmul.f32 %v2476, 0.70710677
    %v2485 = vmul.f32 %v2481, %v2481
    %v2486 = vmin.f32 16.0, %v2485
    %v2487 = vmul.f32 %v2486, 2.1237322e-06
    %v2488 = vadd.f32 %v2487, 0.00028619796
    %v2489 = vmul.f32 %v2486, %v2488
    %v2490 = vadd.f32 %v2489, 0.0036580483
    %v2491 = vmul.f32 %v2486, %v2490
    %v2492 = vadd.f32 %v2491, 0.05243302
    %v2493 = vmul.f32 %v2486, %v2492
    %v2494 = vadd.f32 %v2493, 0.18741608
    %v2495 = vmul.f32 %v2486, %v2494
    %v2496 = vadd.f32 %v2495, 1.1283791
    %v2497 = vmul.f32 %v2481, %v2496
    %v2498 = vmul.f32 %v2486, 3.8918573e-05
    %v2499 = vadd.f32 %v2498, 0.001143296
    %v2500 = vmul.f32 %v2486, %v2499
    %v2501 = vadd.f32 %v2500, 0.014752088
    %v2502 = vmul.f32 %v2486, %v2501
    %v2503 = vadd.f32 %v2502, 0.112945676
    %v2504 = vmul.f32 %v2486, %v2503
    %v2505 = vadd.f32 %v2504, 0.4994258
    %v2506 = vmul.f32 %v2486, %v2505
    %v2507 = vadd.f32 %v2506, 1.0
    %v2508 = vrcp.pop %v2507
    %v2509 = vmul.f32 %v2507, %v2508
    %v2510 = vsub.f32 1.0, %v2509
    %v2511 = vmul.f32 %v2508, %v2510
    %v2512 = vadd.f32 %v2508, %v2511
    %vm2513 = vweird.f32 %v2507
    %vm2514 = vweird.f32 %v2508
    %vm2515 = vmor %vm2513, %vm2514
    %v2516 = vsel %vm2515, %v2508, %v2512
    %v2517 = vand.u32 2147483647, %v2507
    %vm2518 = vcmp.eq.f32.partialorder %v2517, 8.507059e+37
    %v2519 = vand.u32 %v2507, 2147483648
    %v2520 = vor.u32 1.1754944e-38, %v2519
    %v2521 = vsel %vm2518, %v2520, %v2516
    %v2522 = vmul.f32 %v2497, %v2521
    %v2523 = vmin.f32 %v2522, 1.0
    %v2524 = vmax.f32 %v2523, -1.0
    %v2525 = vmul.f32 %v2482, %v2482
    %v2526 = vmin.f32 16.0, %v2525
    %v2527 = vmul.f32 %v2526, 2.1237322e-06
    %v2528 = vadd.f32 %v2527, 0.00028619796
    %v2529 = vmul.f32 %v2526, %v2528
    %v2530 = vadd.f32 %v2529, 0.0036580483
    %v2531 = vmul.f32 %v2526, %v2530
    %v2532 = vadd.f32 %v2531, 0.05243302
    %v2533 = vmul.f32 %v2526, %v2532
    %v2534 = vadd.f32 %v2533, 0.18741608
    %v2535 = vmul.f32 %v2526, %v2534
    %v2536 = vadd.f32 %v2535, 1.1283791
    %v2537 = vmul.f32 %v2482, %v2536
    %v2538 = vmul.f32 %v2526, 3.8918573e-05
    %v2539 = vadd.f32 %v2538, 0.001143296
    %v2540 = vmul.f32 %v2526, %v2539
    %v2541 = vadd.f32 %v2540, 0.014752088
    %v2542 = vmul.f32 %v2526, %v2541
    %v2543 = vadd.f32 %v2542, 0.112945676
    %v2544 = vmul.f32 %v2526, %v2543
    %v2545 = vadd.f32 %v2544, 0.4994258
    %v2546 = vmul.f32 %v2526, %v2545
    %v2547 = vadd.f32 %v2546, 1.0
    %v2548 = vrcp.pop %v2547
    %v2549 = vmul.f32 %v2547, %v2548
    %v2550 = vsub.f32 1.0, %v2549
    %v2551 = vmul.f32 %v2548, %v2550
    %v2552 = vadd.f32 %v2548, %v2551
    %vm2553 = vweird.f32 %v2547
    %vm2554 = vweird.f32 %v2548
    %vm2555 = vmor %vm2553, %vm2554
    %v2556 = vsel %vm2555, %v2548, %v2552
    %v2557 = vand.u32 2147483647, %v2547
    %vm2558 = vcmp.eq.f32.partialorder %v2557, 8.507059e+37
    %v2559 = vand.u32 %v2547, 2147483648
    %v2560 = vor.u32 1.1754944e-38, %v2559
    %v2561 = vsel %vm2558, %v2560, %v2556
    %v2562 = vmul.f32 %v2537, %v2561
    %v2563 = vmin.f32 %v2562, 1.0
    %v2564 = vmax.f32 %v2563, -1.0
    %v2565 = vmul.f32 %v2483, %v2483
    %v2566 = vmin.f32 16.0, %v2565
    %v2567 = vmul.f32 %v2566, 2.1237322e-06
    %v2568 = vadd.f32 %v2567, 0.00028619796
    %v2569 = vmul.f32 %v2566, %v2568
    %v2570 = vadd.f32 %v2569, 0.0036580483
    %v2571 = vmul.f32 %v2566, %v2570
    %v2572 = vadd.f32 %v2571, 0.05243302
    %v2573 = vmul.f32 %v2566, %v2572
    %v2574 = vadd.f32 %v2573, 0.18741608
    %v2575 = vmul.f32 %v2566, %v2574
    %v2576 = vadd.f32 %v2575, 1.1283791
    %v2577 = vmul.f32 %v2483, %v2576
    %v2578 = vmul.f32 %v2566, 3.8918573e-05
    %v2579 = vadd.f32 %v2578, 0.001143296
    %v2580 = vmul.f32 %v2566, %v2579
    %v2581 = vadd.f32 %v2580, 0.014752088
    %v2582 = vmul.f32 %v2566, %v2581
    %v2583 = vadd.f32 %v2582, 0.112945676
    %v2584 = vmul.f32 %v2566, %v2583
    %v2585 = vadd.f32 %v2584, 0.4994258
    %v2586 = vmul.f32 %v2566, %v2585
    %v2587 = vadd.f32 %v2586, 1.0
    %v2588 = vrcp.pop %v2587
    %v2589 = vmul.f32 %v2587, %v2588
    %v2590 = vsub.f32 1.0, %v2589
    %v2591 = vmul.f32 %v2588, %v2590
    %v2592 = vadd.f32 %v2588, %v2591
    %vm2593 = vweird.f32 %v2587
    %vm2594 = vweird.f32 %v2588
    %vm2595 = vmor %vm2593, %vm2594
    %v2596 = vsel %vm2595, %v2588, %v2592
    %v2597 = vand.u32 2147483647, %v2587
    %vm2598 = vcmp.eq.f32.partialorder %v2597, 8.507059e+37
    %v2599 = vand.u32 %v2587, 2147483648
    %v2600 = vor.u32 1.1754944e-38, %v2599
    %v2601 = vsel %vm2598, %v2600, %v2596
    %v2602 = vmul.f32 %v2577, %v2601
    %v2603 = vmin.f32 %v2602, 1.0
    %v2604 = vmax.f32 %v2603, -1.0
    %v2605 = vmul.f32 %v2484, %v2484
    %v2606 = vmin.f32 16.0, %v2605
    %v2607 = vmul.f32 %v2606, 2.1237322e-06
    %v2608 = vadd.f32 %v2607, 0.00028619796
    %v2609 = vmul.f32 %v2606, %v2608
    %v2610 = vadd.f32 %v2609, 0.0036580483
    %v2611 = vmul.f32 %v2606, %v2610
    %v2612 = vadd.f32 %v2611, 0.05243302
    %v2613 = vmul.f32 %v2606, %v2612
    %v2614 = vadd.f32 %v2613, 0.18741608
    %v2615 = vmul.f32 %v2606, %v2614
    %v2616 = vadd.f32 %v2615, 1.1283791
    %v2617 = vmul.f32 %v2484, %v2616
    %v2618 = vmul.f32 %v2606, 3.8918573e-05
    %v2619 = vadd.f32 %v2618, 0.001143296
    %v2620 = vmul.f32 %v2606, %v2619
    %v2621 = vadd.f32 %v2620, 0.014752088
    %v2622 = vmul.f32 %v2606, %v2621
    %v2623 = vadd.f32 %v2622, 0.112945676
    %v2624 = vmul.f32 %v2606, %v2623
    %v2625 = vadd.f32 %v2624, 0.4994258
    %v2626 = vmul.f32 %v2606, %v2625
    %v2627 = vadd.f32 %v2626, 1.0
    %v2628 = vrcp.pop %v2627
    %v2629 = vmul.f32 %v2627, %v2628
    %v2630 = vsub.f32 1.0, %v2629
    %v2631 = vmul.f32 %v2628, %v2630
    %v2632 = vadd.f32 %v2628, %v2631
    %vm2633 = vweird.f32 %v2627
    %vm2634 = vweird.f32 %v2628
    %vm2635 = vmor %vm2633, %vm2634
    %v2636 = vsel %vm2635, %v2628, %v2632
    %v2637 = vand.u32 2147483647, %v2627
    %vm2638 = vcmp.eq.f32.partialorder %v2637, 8.507059e+37
    %v2639 = vand.u32 %v2627, 2147483648
    %v2640 = vor.u32 1.1754944e-38, %v2639
    %v2641 = vsel %vm2638, %v2640, %v2636
    %v2642 = vmul.f32 %v2617, %v2641
    %v2643 = vmin.f32 %v2642, 1.0
    %v2644 = vmax.f32 %v2643, -1.0
    %v2645 = vadd.f32 %v2524, 1.0
    %v2646 = vadd.f32 %v2564, 1.0
    %v2647 = vadd.f32 %v2604, 1.0
    %v2648 = vadd.f32 %v2644, 1.0
    %v2649 = vmul.f32 %v2477, %v2645
    %v2650 = vmul.f32 %v2478, %v2646
    %v2651 = vmul.f32 %v2479, %v2647
    %v2652 = vmul.f32 %v2480, %v2648
    %2653 = vst.msk [vmem:[#allocation2] sm:$0xff] %vm322, %v2649
    %2654 = vst.msk [vmem:[#allocation2 + $0x8] sm:$0xff] %vm322, %v2650
    %2655 = vst.msk [vmem:[#allocation2 + $0x10] sm:$0xff] %vm322, %v2651
    %2656 = vst.msk [vmem:[#allocation2 + $0x18] sm:$0xff] %vm322, %v2652
    // Predicated region
    $region30: #{tpu_custom_call.1} parent=1 // pred_check
      _
    $region31: #{tpu_custom_call.1} parent=1 // pred_check_branch
      %2658 = sbr.rel (0) target = $region33
    $region32: #{tpu_custom_call.1} parent=1 // pred_region
      %2660 = vsyncadd [#allocation3], 0
      %s2661 = sshll.u32 [#allocation2], 4
      %s2662 = int_to_ptr.vmem [resolvable:$true] %s2661
      %s2663 = sshll.u32 %s7, 4
      %s2664 = int_to_ptr.hbm [resolvable:$true] %s2663
      %2669 = dma.vmem_to_hbm [thread:$0]  %s2662, 512, %s2664, [#allocation3], 128, 128, 8
    $region33: #{tpu_custom_call.1} parent=1 // pred_fallthru
      _
    // Predicated region
    $region34: #{tpu_custom_call.1} parent=1 // pred_check
      _
    $region35: #{tpu_custom_call.1} parent=1 // pred_check_branch
      %2671 = sbr.rel (0) target = $region37
    $region36: #{tpu_custom_call.1} parent=1 // pred_region
      %2673 = dma.done [#allocation3], 512
    $region37: #{tpu_custom_call.1} parent=1 // pred_fallthru
      _
    %2674 = vsyncpa [#allocation3], 1

</llo_original>
